<compile_context>
chip_gen: v5e
topology: v5e:2x2
jax: 0.10.0
libtpu: 0.0.40
codegen_flags: <defaults>
</compile_context>

<pallas_src>
import functools

import jax
import jax.numpy as jnp
from jax import lax
from jax.experimental import pallas as pl
from jax.experimental.pallas import tpu as pltpu

VMEM_SPEC = pl.BlockSpec(memory_space=pltpu.MemorySpace.VMEM)


def _sigmoid(x):
    # explicit formula (exp + divide) keeps the Mosaic lowering trivial and
    # matches the pure-JAX reference bit-for-bit in structure.
    return 1.0 / (1.0 + jnp.exp(-x))


def _shift_rows_up(v, k):
    """out[r] = v[r + k]; rows shifted past the end are zero-filled."""
    if k == 0:
        return v
    n = v.shape[0]
    pad = jnp.zeros((k, v.shape[1]), v.dtype)
    return jnp.concatenate([v, pad], axis=0)[k:k + n, :]


# ----------------------------------------------------------------------------
# The single fused forward kernel.
# inputs : tok(BS,1) emb(V,E) [wK,bK]*n_br fc_w(F,H) fc_b(1,H)
#          wih(L,H,4H) whh(L,H,4H) b_lstm(L,1,4H) hx(L,B,H) cx(L,B,H)
#          head_w(H,E+1) head_b(1,E+1)
# outputs: critic(B,1) actor(B,V) hx_new(L,B,H) cx_new(L,B,H)
# ----------------------------------------------------------------------------
def _fused_forward_kernel(*refs, B, S, kernel_sizes):
    n_br = len(kernel_sizes)
    tok_ref, emb_ref = refs[0], refs[1]
    conv_refs = refs[2:2 + 2 * n_br]
    (fcw_ref, fcb_ref, wih_ref, whh_ref, blstm_ref, hx_ref, cx_ref,
     hw_ref, hb_ref,
     critic_ref, actor_ref, hxo_ref, cxo_ref) = refs[2 + 2 * n_br:]

    BS = B * S
    V, E = emb_ref.shape
    L = hx_ref.shape[0]
    H = hx_ref.shape[2]

    # ---- 1) embedding lookup as a one-hot matmul (MXU, emb already in VMEM) ----
    tok = tok_ref[...]                                              # (BS, 1) int32
    lane_ids = lax.broadcasted_iota(jnp.int32, (BS, V), 1)
    onehot = (lane_ids == tok).astype(jnp.float32)                  # (BS, V)
    x_emb = jnp.dot(onehot, emb_ref[...],
                    preferred_element_type=jnp.float32)             # (BS, E)

    # ---- 2) conv branches (+ReLU + global max-pool over time) fused with 3) FC ----
    brow = lax.broadcasted_iota(jnp.int32, (B, 1), 0)               # (B, 1) batch ids
    row_in_seq = lax.broadcasted_iota(jnp.int32, (BS, 1), 0) % S    # (BS, 1) time ids
    x_fc = jnp.zeros((B, H), jnp.float32)
    col_off = 0
    for br, K in enumerate(kernel_sizes):
        w_ref = conv_refs[2 * br]                                   # (K, E, C)
        b_ref = conv_refs[2 * br + 1]                               # (1, C)
        C = w_ref.shape[2]
        T = S - K + 1
        # conv as K whole-batch matmuls combined by shifted accumulation
        acc = jnp.zeros((BS, C), jnp.float32)
        for k in range(K):
            yk = jnp.dot(x_emb, w_ref[k],
                         preferred_element_type=jnp.float32)        # (BS, C)
            acc = acc + _shift_rows_up(yk, k)
        acc = jnp.maximum(acc + b_ref[...], 0.0)                    # bias + ReLU
        acc = jnp.where(row_in_seq < T, acc, 0.0)                   # kill invalid taps
        # per-batch max-pool over time (relu'd values >= 0, masked rows are 0)
        pooled = jnp.zeros((B, C), jnp.float32)
        for b in range(B):
            m_b = jnp.max(acc[b * S:(b + 1) * S, :], axis=0, keepdims=True)  # (1, C)
            pooled = pooled + jnp.where(brow == b, m_b, 0.0)
        # feed this branch straight through its row-slice of the FC weight
        # (replaces the torch.cat of branch features)
        x_fc = x_fc + jnp.dot(pooled, fcw_ref[col_off:col_off + C, :],
                              preferred_element_type=jnp.float32)
        col_off += C
    x = x_fc + fcb_ref[...]                                         # (B, H)

    # ---- 4) single-step multi-layer LSTM, 4 gates batched into one (H,4H) matmul ----
    # TODO(synk): nn.LSTM's dropout=0.2 between layers applies only in training;
    #             inference semantics (no dropout) are implemented here.
    inp = x
    for l in range(L):
        h = hx_ref[l]                                               # (B, H)
        c = cx_ref[l]
        gates = (jnp.dot(inp, wih_ref[l], preferred_element_type=jnp.float32)
                 + jnp.dot(h, whh_ref[l], preferred_element_type=jnp.float32)
                 + blstm_ref[l])                                    # (B, 4H), order i,f,g,o
        i_g = _sigmoid(gates[:, 0 * H:1 * H])
        f_g = _sigmoid(gates[:, 1 * H:2 * H])
        g_g = jnp.tanh(gates[:, 2 * H:3 * H])
        o_g = _sigmoid(gates[:, 3 * H:4 * H])
        c_new = f_g * c + i_g * g_g
        h_new = o_g * jnp.tanh(c_new)
        hxo_ref[l] = h_new
        cxo_ref[l] = c_new
        inp = h_new

    # ---- 5) heads: actor & critic folded into one projection, actor @ emb^T on MXU ----
    proj = jnp.dot(inp, hw_ref[...],
                   preferred_element_type=jnp.float32) + hb_ref[...]  # (B, E+1)
    critic_ref[...] = proj[:, E:E + 1]                              # critic column
    actor_ref[...] = lax.dot_general(                               # (B,E) x (V,E)^T
        proj[:, 0:E], emb_ref[...],
        dimension_numbers=(((1,), (1,)), ((), ())),
        preferred_element_type=jnp.float32)


# ----------------------------------------------------------------------------
# Wrapper: one pallas_call, full-array VMEM blocks, single grid point.
# ----------------------------------------------------------------------------
def a2c_lstm_forward(params, kernel_size, tokens, hx, cx):
    emb = params["video_embeddings"]                                # (V, E)
    B, S = tokens.shape
    V, E = emb.shape
    L, _, H = hx.shape

    tok2d = tokens.reshape(B * S, 1).astype(jnp.int32)

    conv_args = []
    for w, b in params["convs"]:
        conv_args += [w, b]
    n_in = 2 + len(conv_args) + 9

    kernel = functools.partial(_fused_forward_kernel, B=B, S=S,
                               kernel_sizes=tuple(int(k) for k in kernel_size))
    out_shape = (jax.ShapeDtypeStruct((B, 1), jnp.float32),
                 jax.ShapeDtypeStruct((B, V), jnp.float32),
                 jax.ShapeDtypeStruct((L, B, H), jnp.float32),
                 jax.ShapeDtypeStruct((L, B, H), jnp.float32))

    return pl.pallas_call(
        kernel,
        out_shape=out_shape,
        in_specs=[VMEM_SPEC] * n_in,
        out_specs=(VMEM_SPEC,) * 4,
    )(tok2d, emb, *conv_args,
      params["fc_w"], params["fc_b"],
      params["wih"], params["whh"], params["b_lstm"],
      hx, cx,
      params["head_w"], params["head_b"])


# ----------------------------------------------------------------------------
# Pure-JAX reference of the module forward (for a correctness check).
# ----------------------------------------------------------------------------
def reference_forward(params, kernel_size, tokens, hx, cx):
    emb = params["video_embeddings"]
    B, S = tokens.shape
    E = emb.shape[1]
    H = hx.shape[2]
    x_emb = jnp.take(emb, tokens.reshape(-1), axis=0).reshape(B, S, E)

    pooled = []
    for K, (w, b) in zip(kernel_size, params["convs"]):
        T = S - K + 1
        conv = jnp.zeros((B, T, w.shape[2]), jnp.float32)
        for k in range(K):
            conv = conv + jnp.einsum("bte,ec->btc", x_emb[:, k:k + T, :], w[k])
        conv = jnp.maximum(conv + b[None], 0.0)
        pooled.append(jnp.max(conv, axis=1))                        # (B, C)
    feat = jnp.concatenate(pooled, axis=1)
    x = feat @ params["fc_w"] + params["fc_b"]

    inp = x
    hs, cs = [], []
    for l in range(hx.shape[0]):
        gates = inp @ params["wih"][l] + hx[l] @ params["whh"][l] + params["b_lstm"][l]
        i = _sigmoid(gates[:, 0:H])
        f = _sigmoid(gates[:, H:2 * H])
        g = jnp.tanh(gates[:, 2 * H:3 * H])
        o = _sigmoid(gates[:, 3 * H:4 * H])
        c = f * cx[l] + i * g
        h = o * jnp.tanh(c)
        hs.append(h)
        cs.append(c)
        inp = h

    actor_w, critic_w = params["head_w"][:, :E], params["head_w"][:, E:]
    actor_b, critic_b = params["head_b"][:, :E], params["head_b"][:, E:]
    critic = inp @ critic_w + critic_b
    actor = (inp @ actor_w + actor_b) @ emb.T
    return critic, actor, jnp.stack(hs), jnp.stack(cs)


# ----------------------------------------------------------------------------
# Deterministic synthetic parameter construction (fixed key-exhaustion bug by
# using fold_in instead of a pre-counted split).
# ----------------------------------------------------------------------------
def init_params(key, *, vocab, emb_dim, kernel_dim, kernel_size, hidden_dim,
                num_layers):
    counter = iter(range(1 << 20))

    def rnd(shape, scale=0.1):
        return scale * jax.random.normal(jax.random.fold_in(key, next(counter)),
                                         shape, jnp.float32)

    params = {}
    params["video_embeddings"] = rnd((vocab, emb_dim), 1.0)

    # conv weights kept as (K, E, C) (PyTorch (C,1,K,E) re-laid-out for x @ w)
    params["convs"] = [(rnd((K, emb_dim, kernel_dim)), rnd((1, kernel_dim)))
                       for K in kernel_size]

    feat = len(kernel_size) * kernel_dim
    params["fc_w"] = rnd((feat, hidden_dim))                        # (in, out)
    params["fc_b"] = rnd((1, hidden_dim))

    H = hidden_dim
    # LSTM weights pre-transposed to (in, 4H); 4H columns in PyTorch gate order (i,f,g,o);
    # b_lstm is bih + bhh pre-summed into a single bias.
    params["wih"] = rnd((num_layers, H, 4 * H))
    params["whh"] = rnd((num_layers, H, 4 * H))
    params["b_lstm"] = rnd((num_layers, 1, 4 * H))

    # actor Linear (H->E) and critic Linear (H->1) folded into one lane-dense head:
    # columns [:E] = actor, column E = critic (both pre-transposed to (in, out)).
    params["head_w"] = rnd((H, emb_dim + 1))
    params["head_b"] = rnd((1, emb_dim + 1))
    return params


if __name__ == "__main__":
    # small, module-consistent config
    B, S = 2, 8                      # batch, sequence length (token indices)
    VOCAB, EMB = 64, 32              # video_embeddings: (vocab, emb_dim)
    KERNEL_DIM = 16                  # conv output channels
    KERNEL_SIZE = (2, 3)             # conv heights K
    HIDDEN = 32                      # fc / lstm hidden dim  (4H = 128 lanes)
    LAYERS = 2                       # lstm_num_layer

    key = jax.random.PRNGKey(0)
    k_par, k_tok, k_h, k_c = jax.random.split(key, 4)

    params = init_params(k_par, vocab=VOCAB, emb_dim=EMB, kernel_dim=KERNEL_DIM,
                         kernel_size=KERNEL_SIZE, hidden_dim=HIDDEN,
                         num_layers=LAYERS)

    tokens = jax.random.randint(k_tok, (B, S), 0, VOCAB, dtype=jnp.int32)
    hx = 0.1 * jax.random.normal(k_h, (LAYERS, B, HIDDEN), jnp.float32)
    cx = 0.1 * jax.random.normal(k_c, (LAYERS, B, HIDDEN), jnp.float32)

    fwd = jax.jit(a2c_lstm_forward, static_argnums=1)
    critic, actor, hx_new, cx_new = fwd(params, KERNEL_SIZE, tokens, hx, cx)
    jax.block_until_ready((critic, actor, hx_new, cx_new))

    assert critic.shape == (B, 1)
    assert actor.shape == (B, VOCAB)
    assert hx_new.shape == (LAYERS, B, HIDDEN)
    assert cx_new.shape == (LAYERS, B, HIDDEN)

    # numerical check against the plain-JAX reference of the module forward
    with jax.default_matmul_precision("highest"):
        r_critic, r_actor, r_hx, r_cx = reference_forward(params, KERNEL_SIZE,
                                                          tokens, hx, cx)
    for got, want in ((critic, r_critic), (actor, r_actor),
                      (hx_new, r_hx), (cx_new, r_cx)):
        assert jnp.allclose(got, want, rtol=2e-2, atol=2e-3), \
            float(jnp.max(jnp.abs(got - want)))

    print("KERNEL_OK")
</pallas_src>

<mosaic_0001>
module attributes {stable_mosaic.version = 11 : i64} {
  func.func @_fused_forward_kernel(%arg0: memref<16x1xi32, #tpu.memory_space<vmem>>, %arg1: memref<64x32xf32, #tpu.memory_space<vmem>>, %arg2: memref<2x32x16xf32, #tpu.memory_space<vmem>>, %arg3: memref<1x16xf32, #tpu.memory_space<vmem>>, %arg4: memref<3x32x16xf32, #tpu.memory_space<vmem>>, %arg5: memref<1x16xf32, #tpu.memory_space<vmem>>, %arg6: memref<32x32xf32, #tpu.memory_space<vmem>>, %arg7: memref<1x32xf32, #tpu.memory_space<vmem>>, %arg8: memref<2x32x128xf32, #tpu.memory_space<vmem>>, %arg9: memref<2x32x128xf32, #tpu.memory_space<vmem>>, %arg10: memref<2x1x128xf32, #tpu.memory_space<vmem>>, %arg11: memref<2x2x32xf32, #tpu.memory_space<vmem>>, %arg12: memref<2x2x32xf32, #tpu.memory_space<vmem>>, %arg13: memref<32x33xf32, #tpu.memory_space<vmem>>, %arg14: memref<1x33xf32, #tpu.memory_space<vmem>>, %arg15: memref<2x1xf32, #tpu.memory_space<vmem>>, %arg16: memref<2x64xf32, #tpu.memory_space<vmem>>, %arg17: memref<2x2x32xf32, #tpu.memory_space<vmem>>, %arg18: memref<2x2x32xf32, #tpu.memory_space<vmem>>) attributes {dimension_semantics = [], scalar_prefetch = 0 : i64, scratch_operands = 0 : i64, tpu.core_type = #tpu.core_type<tc>} {
    %c0 = arith.constant 0 : index
    %c0_0 = arith.constant 0 : index
    %0 = vector.load %arg0[%c0, %c0_0] : memref<16x1xi32, #tpu.memory_space<vmem>>, vector<16x1xi32>
    %1 = tpu.iota {dimensions = array<i32: 1>} : vector<16x64xi32>
    %2 = vector.broadcast %0 : vector<16x1xi32> to vector<16x64xi32>
    %3 = arith.cmpi eq, %1, %2 : vector<16x64xi32>
    %4 = arith.extui %3 : vector<16x64xi1> to vector<16x64xi32>
    %5 = arith.sitofp %4 : vector<16x64xi32> to vector<16x64xf32>
    %c0_1 = arith.constant 0 : index
    %c0_2 = arith.constant 0 : index
    %6 = vector.load %arg1[%c0_1, %c0_2] : memref<64x32xf32, #tpu.memory_space<vmem>>, vector<64x32xf32>
    %cst = arith.constant dense<0.000000e+00> : vector<16x32xf32>
    %7 = tpu.matmul %5, %6, %cst {dimension_numbers = #tpu.dot_dimension_numbers<[1], [0], [0], [1], [0, 0, 1, 1], [], []>} : vector<16x64xf32>, vector<64x32xf32>, vector<16x32xf32> -> vector<16x32xf32>
    %8 = tpu.iota {dimensions = array<i32: 0>} : vector<2x1xi32>
    %9 = tpu.iota {dimensions = array<i32: 0>} : vector<16x1xi32>
    %c8_i32 = arith.constant 8 : i32
    %c0_i32 = arith.constant 0 : i32
    %10 = arith.cmpi eq, %c8_i32, %c0_i32 : i32
    %c1_i32 = arith.constant 1 : i32
    %11 = arith.select %10, %c1_i32, %c8_i32 : i32
    %12 = vector.broadcast %11 : i32 to vector<16x1xi32>
    %13 = arith.remsi %9, %12 : vector<16x1xi32>
    %c0_i32_3 = arith.constant 0 : i32
    %14 = vector.broadcast %c0_i32_3 : i32 to vector<16x1xi32>
    %15 = arith.cmpi ne, %13, %14 : vector<16x1xi32>
    %c0_i32_4 = arith.constant 0 : i32
    %16 = vector.broadcast %c0_i32_4 : i32 to vector<16x1xi32>
    %17 = arith.cmpi slt, %13, %16 : vector<16x1xi32>
    %c0_i32_5 = arith.constant 0 : i32
    %18 = arith.cmpi slt, %11, %c0_i32_5 : i32
    %19 = vector.broadcast %18 : i1 to vector<16x1xi1>
    %20 = vector.broadcast %19 : vector<16x1xi1> to vector<16x1xi1>
    %21 = arith.xori %17, %20 : vector<16x1xi1>
    %22 = arith.andi %21, %15 : vector<16x1xi1>
    %23 = vector.broadcast %11 : i32 to vector<16x1xi32>
    %24 = arith.addi %13, %23 : vector<16x1xi32>
    %25 = arith.select %22, %24, %13 : vector<16x1xi1>, vector<16x1xi32>
    %cst_6 = arith.constant 0.000000e+00 : f32
    %26 = vector.broadcast %cst_6 : f32 to vector<2x32xf32>
    %cst_7 = arith.constant 0.000000e+00 : f32
    %27 = vector.broadcast %cst_7 : f32 to vector<16x16xf32>
    %c0_8 = arith.constant 0 : index
    %c0_9 = arith.constant 0 : index
    %c0_10 = arith.constant 0 : index
    %28 = vector.load %arg2[%c0_8, %c0_9, %c0_10] : memref<2x32x16xf32, #tpu.memory_space<vmem>>, vector<1x32x16xf32>
    %29 = vector.shape_cast %28 : vector<1x32x16xf32> to vector<32x16xf32>
    %cst_11 = arith.constant dense<0.000000e+00> : vector<16x16xf32>
    %30 = tpu.matmul %7, %29, %cst_11 {dimension_numbers = #tpu.dot_dimension_numbers<[1], [0], [0], [1], [0, 0, 1, 1], [], []>} : vector<16x32xf32>, vector<32x16xf32>, vector<16x16xf32> -> vector<16x16xf32>
    %31 = arith.addf %27, %30 : vector<16x16xf32>
    %c1 = arith.constant 1 : index
    %c0_12 = arith.constant 0 : index
    %c0_13 = arith.constant 0 : index
    %32 = vector.load %arg2[%c1, %c0_12, %c0_13] : memref<2x32x16xf32, #tpu.memory_space<vmem>>, vector<1x32x16xf32>
    %33 = vector.shape_cast %32 : vector<1x32x16xf32> to vector<32x16xf32>
    %cst_14 = arith.constant dense<0.000000e+00> : vector<16x16xf32>
    %34 = tpu.matmul %7, %33, %cst_14 {dimension_numbers = #tpu.dot_dimension_numbers<[1], [0], [0], [1], [0, 0, 1, 1], [], []>} : vector<16x32xf32>, vector<32x16xf32>, vector<16x16xf32> -> vector<16x16xf32>
    %cst_15 = arith.constant 0.000000e+00 : f32
    %35 = vector.broadcast %cst_15 : f32 to vector<1x16xf32>
    %36 = tpu.concatenate %34, %35 in 0 : vector<16x16xf32>, vector<1x16xf32> -> vector<17x16xf32>
    %37 = vector.extract_strided_slice %36 {offsets = [1, 0], sizes = [16, 16], strides = [1, 1]} : vector<17x16xf32> to vector<16x16xf32>
    %38 = arith.addf %31, %37 : vector<16x16xf32>
    %c0_16 = arith.constant 0 : index
    %c0_17 = arith.constant 0 : index
    %39 = vector.load %arg3[%c0_16, %c0_17] : memref<1x16xf32, #tpu.memory_space<vmem>>, vector<1x16xf32>
    %40 = vector.broadcast %39 : vector<1x16xf32> to vector<16x16xf32>
    %41 = arith.addf %38, %40 : vector<16x16xf32>
    %cst_18 = arith.constant 0.000000e+00 : f32
    %42 = vector.broadcast %cst_18 : f32 to vector<16x16xf32>
    %43 = arith.maximumf %41, %42 : vector<16x16xf32>
    %c7_i32 = arith.constant 7 : i32
    %44 = vector.broadcast %c7_i32 : i32 to vector<16x1xi32>
    %45 = arith.cmpi slt, %25, %44 : vector<16x1xi32>
    %cst_19 = arith.constant 0.000000e+00 : f32
    %46 = vector.shape_cast %45 : vector<16x1xi1> to vector<16x1xi1>
    %47 = vector.broadcast %46 : vector<16x1xi1> to vector<16x16xi1>
    %48 = vector.broadcast %cst_19 : f32 to vector<16x16xf32>
    %49 = arith.select %47, %43, %48 : vector<16x16xi1>, vector<16x16xf32>
    %cst_20 = arith.constant 0.000000e+00 : f32
    %50 = vector.broadcast %cst_20 : f32 to vector<2x16xf32>
    %51 = vector.extract_strided_slice %49 {offsets = [0, 0], sizes = [8, 16], strides = [1, 1]} : vector<16x16xf32> to vector<8x16xf32>
    %cst_21 = arith.constant dense<0xFF800000> : vector<16xf32>
    %52 = vector.multi_reduction <maximumf>, %51, %cst_21 [0] : vector<8x16xf32> to vector<16xf32>
    %53 = vector.shape_cast %52 : vector<16xf32> to vector<1x16xf32>
    %c0_i32_22 = arith.constant 0 : i32
    %54 = vector.broadcast %c0_i32_22 : i32 to vector<2x1xi32>
    %55 = arith.cmpi eq, %8, %54 : vector<2x1xi32>
    %cst_23 = arith.constant 0.000000e+00 : f32
    %56 = vector.shape_cast %55 : vector<2x1xi1> to vector<2x1xi1>
    %57 = vector.broadcast %56 : vector<2x1xi1> to vector<2x16xi1>
    %58 = vector.shape_cast %53 : vector<1x16xf32> to vector<1x16xf32>
    %59 = vector.broadcast %58 : vector<1x16xf32> to vector<2x16xf32>
    %60 = vector.broadcast %cst_23 : f32 to vector<2x16xf32>
    %61 = arith.select %57, %59, %60 : vector<2x16xi1>, vector<2x16xf32>
    %62 = arith.addf %50, %61 : vector<2x16xf32>
    %63 = vector.extract_strided_slice %49 {offsets = [8, 0], sizes = [8, 16], strides = [1, 1]} : vector<16x16xf32> to vector<8x16xf32>
    %cst_24 = arith.constant dense<0xFF800000> : vector<16xf32>
    %64 = vector.multi_reduction <maximumf>, %63, %cst_24 [0] : vector<8x16xf32> to vector<16xf32>
    %65 = vector.shape_cast %64 : vector<16xf32> to vector<1x16xf32>
    %c1_i32_25 = arith.constant 1 : i32
    %66 = vector.broadcast %c1_i32_25 : i32 to vector<2x1xi32>
    %67 = arith.cmpi eq, %8, %66 : vector<2x1xi32>
    %cst_26 = arith.constant 0.000000e+00 : f32
    %68 = vector.shape_cast %67 : vector<2x1xi1> to vector<2x1xi1>
    %69 = vector.broadcast %68 : vector<2x1xi1> to vector<2x16xi1>
    %70 = vector.shape_cast %65 : vector<1x16xf32> to vector<1x16xf32>
    %71 = vector.broadcast %70 : vector<1x16xf32> to vector<2x16xf32>
    %72 = vector.broadcast %cst_26 : f32 to vector<2x16xf32>
    %73 = arith.select %69, %71, %72 : vector<2x16xi1>, vector<2x16xf32>
    %74 = arith.addf %62, %73 : vector<2x16xf32>
    %c0_27 = arith.constant 0 : index
    %c0_28 = arith.constant 0 : index
    %75 = vector.load %arg6[%c0_27, %c0_28] : memref<32x32xf32, #tpu.memory_space<vmem>>, vector<16x32xf32>
    %cst_29 = arith.constant dense<0.000000e+00> : vector<2x32xf32>
    %76 = tpu.matmul %74, %75, %cst_29 {dimension_numbers = #tpu.dot_dimension_numbers<[1], [0], [0], [1], [0, 0, 1, 1], [], []>} : vector<2x16xf32>, vector<16x32xf32>, vector<2x32xf32> -> vector<2x32xf32>
    %77 = arith.addf %26, %76 : vector<2x32xf32>
    %cst_30 = arith.constant 0.000000e+00 : f32
    %78 = vector.broadcast %cst_30 : f32 to vector<16x16xf32>
    %c0_31 = arith.constant 0 : index
    %c0_32 = arith.constant 0 : index
    %c0_33 = arith.constant 0 : index
    %79 = vector.load %arg4[%c0_31, %c0_32, %c0_33] : memref<3x32x16xf32, #tpu.memory_space<vmem>>, vector<1x32x16xf32>
    %80 = vector.shape_cast %79 : vector<1x32x16xf32> to vector<32x16xf32>
    %cst_34 = arith.constant dense<0.000000e+00> : vector<16x16xf32>
    %81 = tpu.matmul %7, %80, %cst_34 {dimension_numbers = #tpu.dot_dimension_numbers<[1], [0], [0], [1], [0, 0, 1, 1], [], []>} : vector<16x32xf32>, vector<32x16xf32>, vector<16x16xf32> -> vector<16x16xf32>
    %82 = arith.addf %78, %81 : vector<16x16xf32>
    %c1_35 = arith.constant 1 : index
    %c0_36 = arith.constant 0 : index
    %c0_37 = arith.constant 0 : index
    %83 = vector.load %arg4[%c1_35, %c0_36, %c0_37] : memref<3x32x16xf32, #tpu.memory_space<vmem>>, vector<1x32x16xf32>
    %84 = vector.shape_cast %83 : vector<1x32x16xf32> to vector<32x16xf32>
    %cst_38 = arith.constant dense<0.000000e+00> : vector<16x16xf32>
    %85 = tpu.matmul %7, %84, %cst_38 {dimension_numbers = #tpu.dot_dimension_numbers<[1], [0], [0], [1], [0, 0, 1, 1], [], []>} : vector<16x32xf32>, vector<32x16xf32>, vector<16x16xf32> -> vector<16x16xf32>
    %cst_39 = arith.constant 0.000000e+00 : f32
    %86 = vector.broadcast %cst_39 : f32 to vector<1x16xf32>
    %87 = tpu.concatenate %85, %86 in 0 : vector<16x16xf32>, vector<1x16xf32> -> vector<17x16xf32>
    %88 = vector.extract_strided_slice %87 {offsets = [1, 0], sizes = [16, 16], strides = [1, 1]} : vector<17x16xf32> to vector<16x16xf32>
    %89 = arith.addf %82, %88 : vector<16x16xf32>
    %c2 = arith.constant 2 : index
    %c0_40 = arith.constant 0 : index
    %c0_41 = arith.constant 0 : index
    %90 = vector.load %arg4[%c2, %c0_40, %c0_41] : memref<3x32x16xf32, #tpu.memory_space<vmem>>, vector<1x32x16xf32>
    %91 = vector.shape_cast %90 : vector<1x32x16xf32> to vector<32x16xf32>
    %cst_42 = arith.constant dense<0.000000e+00> : vector<16x16xf32>
    %92 = tpu.matmul %7, %91, %cst_42 {dimension_numbers = #tpu.dot_dimension_numbers<[1], [0], [0], [1], [0, 0, 1, 1], [], []>} : vector<16x32xf32>, vector<32x16xf32>, vector<16x16xf32> -> vector<16x16xf32>
    %cst_43 = arith.constant 0.000000e+00 : f32
    %93 = vector.broadcast %cst_43 : f32 to vector<2x16xf32>
    %94 = tpu.concatenate %92, %93 in 0 : vector<16x16xf32>, vector<2x16xf32> -> vector<18x16xf32>
    %95 = vector.extract_strided_slice %94 {offsets = [2, 0], sizes = [16, 16], strides = [1, 1]} : vector<18x16xf32> to vector<16x16xf32>
    %96 = arith.addf %89, %95 : vector<16x16xf32>
    %c0_44 = arith.constant 0 : index
    %c0_45 = arith.constant 0 : index
    %97 = vector.load %arg5[%c0_44, %c0_45] : memref<1x16xf32, #tpu.memory_space<vmem>>, vector<1x16xf32>
    %98 = vector.broadcast %97 : vector<1x16xf32> to vector<16x16xf32>
    %99 = arith.addf %96, %98 : vector<16x16xf32>
    %cst_46 = arith.constant 0.000000e+00 : f32
    %100 = vector.broadcast %cst_46 : f32 to vector<16x16xf32>
    %101 = arith.maximumf %99, %100 : vector<16x16xf32>
    %c6_i32 = arith.constant 6 : i32
    %102 = vector.broadcast %c6_i32 : i32 to vector<16x1xi32>
    %103 = arith.cmpi slt, %25, %102 : vector<16x1xi32>
    %cst_47 = arith.constant 0.000000e+00 : f32
    %104 = vector.shape_cast %103 : vector<16x1xi1> to vector<16x1xi1>
    %105 = vector.broadcast %104 : vector<16x1xi1> to vector<16x16xi1>
    %106 = vector.broadcast %cst_47 : f32 to vector<16x16xf32>
    %107 = arith.select %105, %101, %106 : vector<16x16xi1>, vector<16x16xf32>
    %cst_48 = arith.constant 0.000000e+00 : f32
    %108 = vector.broadcast %cst_48 : f32 to vector<2x16xf32>
    %109 = vector.extract_strided_slice %107 {offsets = [0, 0], sizes = [8, 16], strides = [1, 1]} : vector<16x16xf32> to vector<8x16xf32>
    %cst_49 = arith.constant dense<0xFF800000> : vector<16xf32>
    %110 = vector.multi_reduction <maximumf>, %109, %cst_49 [0] : vector<8x16xf32> to vector<16xf32>
    %111 = vector.shape_cast %110 : vector<16xf32> to vector<1x16xf32>
    %c0_i32_50 = arith.constant 0 : i32
    %112 = vector.broadcast %c0_i32_50 : i32 to vector<2x1xi32>
    %113 = arith.cmpi eq, %8, %112 : vector<2x1xi32>
    %cst_51 = arith.constant 0.000000e+00 : f32
    %114 = vector.shape_cast %113 : vector<2x1xi1> to vector<2x1xi1>
    %115 = vector.broadcast %114 : vector<2x1xi1> to vector<2x16xi1>
    %116 = vector.shape_cast %111 : vector<1x16xf32> to vector<1x16xf32>
    %117 = vector.broadcast %116 : vector<1x16xf32> to vector<2x16xf32>
    %118 = vector.broadcast %cst_51 : f32 to vector<2x16xf32>
    %119 = arith.select %115, %117, %118 : vector<2x16xi1>, vector<2x16xf32>
    %120 = arith.addf %108, %119 : vector<2x16xf32>
    %121 = vector.extract_strided_slice %107 {offsets = [8, 0], sizes = [8, 16], strides = [1, 1]} : vector<16x16xf32> to vector<8x16xf32>
    %cst_52 = arith.constant dense<0xFF800000> : vector<16xf32>
    %122 = vector.multi_reduction <maximumf>, %121, %cst_52 [0] : vector<8x16xf32> to vector<16xf32>
    %123 = vector.shape_cast %122 : vector<16xf32> to vector<1x16xf32>
    %c1_i32_53 = arith.constant 1 : i32
    %124 = vector.broadcast %c1_i32_53 : i32 to vector<2x1xi32>
    %125 = arith.cmpi eq, %8, %124 : vector<2x1xi32>
    %cst_54 = arith.constant 0.000000e+00 : f32
    %126 = vector.shape_cast %125 : vector<2x1xi1> to vector<2x1xi1>
    %127 = vector.broadcast %126 : vector<2x1xi1> to vector<2x16xi1>
    %128 = vector.shape_cast %123 : vector<1x16xf32> to vector<1x16xf32>
    %129 = vector.broadcast %128 : vector<1x16xf32> to vector<2x16xf32>
    %130 = vector.broadcast %cst_54 : f32 to vector<2x16xf32>
    %131 = arith.select %127, %129, %130 : vector<2x16xi1>, vector<2x16xf32>
    %132 = arith.addf %120, %131 : vector<2x16xf32>
    %c16 = arith.constant 16 : index
    %c0_55 = arith.constant 0 : index
    %133 = vector.load %arg6[%c16, %c0_55] : memref<32x32xf32, #tpu.memory_space<vmem>>, vector<16x32xf32>
    %cst_56 = arith.constant dense<0.000000e+00> : vector<2x32xf32>
    %134 = tpu.matmul %132, %133, %cst_56 {dimension_numbers = #tpu.dot_dimension_numbers<[1], [0], [0], [1], [0, 0, 1, 1], [], []>} : vector<2x16xf32>, vector<16x32xf32>, vector<2x32xf32> -> vector<2x32xf32>
    %135 = arith.addf %77, %134 : vector<2x32xf32>
    %c0_57 = arith.constant 0 : index
    %c0_58 = arith.constant 0 : index
    %136 = vector.load %arg7[%c0_57, %c0_58] : memref<1x32xf32, #tpu.memory_space<vmem>>, vector<1x32xf32>
    %137 = vector.broadcast %136 : vector<1x32xf32> to vector<2x32xf32>
    %138 = arith.addf %135, %137 : vector<2x32xf32>
    %c0_59 = arith.constant 0 : index
    %c0_60 = arith.constant 0 : index
    %c0_61 = arith.constant 0 : index
    %139 = vector.load %arg11[%c0_59, %c0_60, %c0_61] : memref<2x2x32xf32, #tpu.memory_space<vmem>>, vector<1x2x32xf32>
    %140 = vector.shape_cast %139 : vector<1x2x32xf32> to vector<2x32xf32>
    %c0_62 = arith.constant 0 : index
    %c0_63 = arith.constant 0 : index
    %c0_64 = arith.constant 0 : index
    %141 = vector.load %arg12[%c0_62, %c0_63, %c0_64] : memref<2x2x32xf32, #tpu.memory_space<vmem>>, vector<1x2x32xf32>
    %142 = vector.shape_cast %141 : vector<1x2x32xf32> to vector<2x32xf32>
    %c0_65 = arith.constant 0 : index
    %c0_66 = arith.constant 0 : index
    %c0_67 = arith.constant 0 : index
    %143 = vector.load %arg8[%c0_65, %c0_66, %c0_67] : memref<2x32x128xf32, #tpu.memory_space<vmem>>, vector<1x32x128xf32>
    %144 = vector.shape_cast %143 : vector<1x32x128xf32> to vector<32x128xf32>
    %cst_68 = arith.constant dense<0.000000e+00> : vector<2x128xf32>
    %145 = tpu.matmul %138, %144, %cst_68 {dimension_numbers = #tpu.dot_dimension_numbers<[1], [0], [0], [1], [0, 0, 1, 1], [], []>} : vector<2x32xf32>, vector<32x128xf32>, vector<2x128xf32> -> vector<2x128xf32>
    %c0_69 = arith.constant 0 : index
    %c0_70 = arith.constant 0 : index
    %c0_71 = arith.constant 0 : index
    %146 = vector.load %arg9[%c0_69, %c0_70, %c0_71] : memref<2x32x128xf32, #tpu.memory_space<vmem>>, vector<1x32x128xf32>
    %147 = vector.shape_cast %146 : vector<1x32x128xf32> to vector<32x128xf32>
    %cst_72 = arith.constant dense<0.000000e+00> : vector<2x128xf32>
    %148 = tpu.matmul %140, %147, %cst_72 {dimension_numbers = #tpu.dot_dimension_numbers<[1], [0], [0], [1], [0, 0, 1, 1], [], []>} : vector<2x32xf32>, vector<32x128xf32>, vector<2x128xf32> -> vector<2x128xf32>
    %149 = arith.addf %145, %148 : vector<2x128xf32>
    %c0_73 = arith.constant 0 : index
    %c0_74 = arith.constant 0 : index
    %c0_75 = arith.constant 0 : index
    %150 = vector.load %arg10[%c0_73, %c0_74, %c0_75] : memref<2x1x128xf32, #tpu.memory_space<vmem>>, vector<1x1x128xf32>
    %151 = vector.shape_cast %150 : vector<1x1x128xf32> to vector<1x128xf32>
    %152 = vector.broadcast %151 : vector<1x128xf32> to vector<2x128xf32>
    %153 = arith.addf %149, %152 : vector<2x128xf32>
    %154 = vector.extract_strided_slice %153 {offsets = [0, 0], sizes = [2, 32], strides = [1, 1]} : vector<2x128xf32> to vector<2x32xf32>
    %cst_76 = arith.constant 0.000000e+00 : f32
    %155 = vector.broadcast %cst_76 : f32 to vector<2x32xf32>
    %156 = arith.subf %155, %154 : vector<2x32xf32>
    %157 = math.exp %156 : vector<2x32xf32>
    %cst_77 = arith.constant 1.000000e+00 : f32
    %158 = vector.broadcast %cst_77 : f32 to vector<2x32xf32>
    %159 = arith.addf %158, %157 : vector<2x32xf32>
    %cst_78 = arith.constant 1.000000e+00 : f32
    %160 = vector.broadcast %cst_78 : f32 to vector<2x32xf32>
    %161 = arith.divf %160, %159 : vector<2x32xf32>
    %162 = vector.extract_strided_slice %153 {offsets = [0, 32], sizes = [2, 32], strides = [1, 1]} : vector<2x128xf32> to vector<2x32xf32>
    %cst_79 = arith.constant 0.000000e+00 : f32
    %163 = vector.broadcast %cst_79 : f32 to vector<2x32xf32>
    %164 = arith.subf %163, %162 : vector<2x32xf32>
    %165 = math.exp %164 : vector<2x32xf32>
    %cst_80 = arith.constant 1.000000e+00 : f32
    %166 = vector.broadcast %cst_80 : f32 to vector<2x32xf32>
    %167 = arith.addf %166, %165 : vector<2x32xf32>
    %cst_81 = arith.constant 1.000000e+00 : f32
    %168 = vector.broadcast %cst_81 : f32 to vector<2x32xf32>
    %169 = arith.divf %168, %167 : vector<2x32xf32>
    %170 = vector.extract_strided_slice %153 {offsets = [0, 64], sizes = [2, 32], strides = [1, 1]} : vector<2x128xf32> to vector<2x32xf32>
    %171 = math.tanh %170 : vector<2x32xf32>
    %172 = vector.extract_strided_slice %153 {offsets = [0, 96], sizes = [2, 32], strides = [1, 1]} : vector<2x128xf32> to vector<2x32xf32>
    %cst_82 = arith.constant 0.000000e+00 : f32
    %173 = vector.broadcast %cst_82 : f32 to vector<2x32xf32>
    %174 = arith.subf %173, %172 : vector<2x32xf32>
    %175 = math.exp %174 : vector<2x32xf32>
    %cst_83 = arith.constant 1.000000e+00 : f32
    %176 = vector.broadcast %cst_83 : f32 to vector<2x32xf32>
    %177 = arith.addf %176, %175 : vector<2x32xf32>
    %cst_84 = arith.constant 1.000000e+00 : f32
    %178 = vector.broadcast %cst_84 : f32 to vector<2x32xf32>
    %179 = arith.divf %178, %177 : vector<2x32xf32>
    %180 = arith.mulf %169, %142 : vector<2x32xf32>
    %181 = arith.mulf %161, %171 : vector<2x32xf32>
    %182 = arith.addf %180, %181 : vector<2x32xf32>
    %183 = math.tanh %182 : vector<2x32xf32>
    %184 = arith.mulf %179, %183 : vector<2x32xf32>
    %c0_85 = arith.constant 0 : index
    %c0_86 = arith.constant 0 : index
    %c0_87 = arith.constant 0 : index
    %185 = vector.load %arg17[%c0_85, %c0_86, %c0_87] : memref<2x2x32xf32, #tpu.memory_space<vmem>>, vector<1x2x32xf32>
    %186 = vector.shape_cast %185 : vector<1x2x32xf32> to vector<2x32xf32>
    %187 = vector.shape_cast %184 : vector<2x32xf32> to vector<1x2x32xf32>
    tpu.vector_store %arg17[%c0_85, %c0_86, %c0_87], %187 {strides = array<i32>} : memref<2x2x32xf32, #tpu.memory_space<vmem>>, vector<1x2x32xf32>,
    %c0_88 = arith.constant 0 : index
    %c0_89 = arith.constant 0 : index
    %c0_90 = arith.constant 0 : index
    %188 = vector.load %arg18[%c0_88, %c0_89, %c0_90] : memref<2x2x32xf32, #tpu.memory_space<vmem>>, vector<1x2x32xf32>
    %189 = vector.shape_cast %188 : vector<1x2x32xf32> to vector<2x32xf32>
    %190 = vector.shape_cast %182 : vector<2x32xf32> to vector<1x2x32xf32>
    tpu.vector_store %arg18[%c0_88, %c0_89, %c0_90], %190 {strides = array<i32>} : memref<2x2x32xf32, #tpu.memory_space<vmem>>, vector<1x2x32xf32>,
    %c1_91 = arith.constant 1 : index
    %c0_92 = arith.constant 0 : index
    %c0_93 = arith.constant 0 : index
    %191 = vector.load %arg11[%c1_91, %c0_92, %c0_93] : memref<2x2x32xf32, #tpu.memory_space<vmem>>, vector<1x2x32xf32>
    %192 = vector.shape_cast %191 : vector<1x2x32xf32> to vector<2x32xf32>
    %c1_94 = arith.constant 1 : index
    %c0_95 = arith.constant 0 : index
    %c0_96 = arith.constant 0 : index
    %193 = vector.load %arg12[%c1_94, %c0_95, %c0_96] : memref<2x2x32xf32, #tpu.memory_space<vmem>>, vector<1x2x32xf32>
    %194 = vector.shape_cast %193 : vector<1x2x32xf32> to vector<2x32xf32>
    %c1_97 = arith.constant 1 : index
    %c0_98 = arith.constant 0 : index
    %c0_99 = arith.constant 0 : index
    %195 = vector.load %arg8[%c1_97, %c0_98, %c0_99] : memref<2x32x128xf32, #tpu.memory_space<vmem>>, vector<1x32x128xf32>
    %196 = vector.shape_cast %195 : vector<1x32x128xf32> to vector<32x128xf32>
    %cst_100 = arith.constant dense<0.000000e+00> : vector<2x128xf32>
    %197 = tpu.matmul %184, %196, %cst_100 {dimension_numbers = #tpu.dot_dimension_numbers<[1], [0], [0], [1], [0, 0, 1, 1], [], []>} : vector<2x32xf32>, vector<32x128xf32>, vector<2x128xf32> -> vector<2x128xf32>
    %c1_101 = arith.constant 1 : index
    %c0_102 = arith.constant 0 : index
    %c0_103 = arith.constant 0 : index
    %198 = vector.load %arg9[%c1_101, %c0_102, %c0_103] : memref<2x32x128xf32, #tpu.memory_space<vmem>>, vector<1x32x128xf32>
    %199 = vector.shape_cast %198 : vector<1x32x128xf32> to vector<32x128xf32>
    %cst_104 = arith.constant dense<0.000000e+00> : vector<2x128xf32>
    %200 = tpu.matmul %192, %199, %cst_104 {dimension_numbers = #tpu.dot_dimension_numbers<[1], [0], [0], [1], [0, 0, 1, 1], [], []>} : vector<2x32xf32>, vector<32x128xf32>, vector<2x128xf32> -> vector<2x128xf32>
    %201 = arith.addf %197, %200 : vector<2x128xf32>
    %c1_105 = arith.constant 1 : index
    %c0_106 = arith.constant 0 : index
    %c0_107 = arith.constant 0 : index
    %202 = vector.load %arg10[%c1_105, %c0_106, %c0_107] : memref<2x1x128xf32, #tpu.memory_space<vmem>>, vector<1x1x128xf32>
    %203 = vector.shape_cast %202 : vector<1x1x128xf32> to vector<1x128xf32>
    %204 = vector.broadcast %203 : vector<1x128xf32> to vector<2x128xf32>
    %205 = arith.addf %201, %204 : vector<2x128xf32>
    %206 = vector.extract_strided_slice %205 {offsets = [0, 0], sizes = [2, 32], strides = [1, 1]} : vector<2x128xf32> to vector<2x32xf32>
    %cst_108 = arith.constant 0.000000e+00 : f32
    %207 = vector.broadcast %cst_108 : f32 to vector<2x32xf32>
    %208 = arith.subf %207, %206 : vector<2x32xf32>
    %209 = math.exp %208 : vector<2x32xf32>
    %cst_109 = arith.constant 1.000000e+00 : f32
    %210 = vector.broadcast %cst_109 : f32 to vector<2x32xf32>
    %211 = arith.addf %210, %209 : vector<2x32xf32>
    %cst_110 = arith.constant 1.000000e+00 : f32
    %212 = vector.broadcast %cst_110 : f32 to vector<2x32xf32>
    %213 = arith.divf %212, %211 : vector<2x32xf32>
    %214 = vector.extract_strided_slice %205 {offsets = [0, 32], sizes = [2, 32], strides = [1, 1]} : vector<2x128xf32> to vector<2x32xf32>
    %cst_111 = arith.constant 0.000000e+00 : f32
    %215 = vector.broadcast %cst_111 : f32 to vector<2x32xf32>
    %216 = arith.subf %215, %214 : vector<2x32xf32>
    %217 = math.exp %216 : vector<2x32xf32>
    %cst_112 = arith.constant 1.000000e+00 : f32
    %218 = vector.broadcast %cst_112 : f32 to vector<2x32xf32>
    %219 = arith.addf %218, %217 : vector<2x32xf32>
    %cst_113 = arith.constant 1.000000e+00 : f32
    %220 = vector.broadcast %cst_113 : f32 to vector<2x32xf32>
    %221 = arith.divf %220, %219 : vector<2x32xf32>
    %222 = vector.extract_strided_slice %205 {offsets = [0, 64], sizes = [2, 32], strides = [1, 1]} : vector<2x128xf32> to vector<2x32xf32>
    %223 = math.tanh %222 : vector<2x32xf32>
    %224 = vector.extract_strided_slice %205 {offsets = [0, 96], sizes = [2, 32], strides = [1, 1]} : vector<2x128xf32> to vector<2x32xf32>
    %cst_114 = arith.constant 0.000000e+00 : f32
    %225 = vector.broadcast %cst_114 : f32 to vector<2x32xf32>
    %226 = arith.subf %225, %224 : vector<2x32xf32>
    %227 = math.exp %226 : vector<2x32xf32>
    %cst_115 = arith.constant 1.000000e+00 : f32
    %228 = vector.broadcast %cst_115 : f32 to vector<2x32xf32>
    %229 = arith.addf %228, %227 : vector<2x32xf32>
    %cst_116 = arith.constant 1.000000e+00 : f32
    %230 = vector.broadcast %cst_116 : f32 to vector<2x32xf32>
    %231 = arith.divf %230, %229 : vector<2x32xf32>
    %232 = arith.mulf %221, %194 : vector<2x32xf32>
    %233 = arith.mulf %213, %223 : vector<2x32xf32>
    %234 = arith.addf %232, %233 : vector<2x32xf32>
    %235 = math.tanh %234 : vector<2x32xf32>
    %236 = arith.mulf %231, %235 : vector<2x32xf32>
    %c1_117 = arith.constant 1 : index
    %c0_118 = arith.constant 0 : index
    %c0_119 = arith.constant 0 : index
    %237 = vector.load %arg17[%c1_117, %c0_118, %c0_119] : memref<2x2x32xf32, #tpu.memory_space<vmem>>, vector<1x2x32xf32>
    %238 = vector.shape_cast %237 : vector<1x2x32xf32> to vector<2x32xf32>
    %239 = vector.shape_cast %236 : vector<2x32xf32> to vector<1x2x32xf32>
    tpu.vector_store %arg17[%c1_117, %c0_118, %c0_119], %239 {strides = array<i32>} : memref<2x2x32xf32, #tpu.memory_space<vmem>>, vector<1x2x32xf32>,
    %c1_120 = arith.constant 1 : index
    %c0_121 = arith.constant 0 : index
    %c0_122 = arith.constant 0 : index
    %240 = vector.load %arg18[%c1_120, %c0_121, %c0_122] : memref<2x2x32xf32, #tpu.memory_space<vmem>>, vector<1x2x32xf32>
    %241 = vector.shape_cast %240 : vector<1x2x32xf32> to vector<2x32xf32>
    %242 = vector.shape_cast %234 : vector<2x32xf32> to vector<1x2x32xf32>
    tpu.vector_store %arg18[%c1_120, %c0_121, %c0_122], %242 {strides = array<i32>} : memref<2x2x32xf32, #tpu.memory_space<vmem>>, vector<1x2x32xf32>,
    %c0_123 = arith.constant 0 : index
    %c0_124 = arith.constant 0 : index
    %243 = vector.load %arg13[%c0_123, %c0_124] : memref<32x33xf32, #tpu.memory_space<vmem>>, vector<32x33xf32>
    %cst_125 = arith.constant dense<0.000000e+00> : vector<2x33xf32>
    %244 = tpu.matmul %236, %243, %cst_125 {dimension_numbers = #tpu.dot_dimension_numbers<[1], [0], [0], [1], [0, 0, 1, 1], [], []>} : vector<2x32xf32>, vector<32x33xf32>, vector<2x33xf32> -> vector<2x33xf32>
    %c0_126 = arith.constant 0 : index
    %c0_127 = arith.constant 0 : index
    %245 = vector.load %arg14[%c0_126, %c0_127] : memref<1x33xf32, #tpu.memory_space<vmem>>, vector<1x33xf32>
    %246 = vector.broadcast %245 : vector<1x33xf32> to vector<2x33xf32>
    %247 = arith.addf %244, %246 : vector<2x33xf32>
    %248 = vector.extract_strided_slice %247 {offsets = [0, 32], sizes = [2, 1], strides = [1, 1]} : vector<2x33xf32> to vector<2x1xf32>
    %c0_128 = arith.constant 0 : index
    %c0_129 = arith.constant 0 : index
    %249 = vector.load %arg15[%c0_128, %c0_129] : memref<2x1xf32, #tpu.memory_space<vmem>>, vector<2x1xf32>
    tpu.vector_store %arg15[%c0_128, %c0_129], %248 {strides = array<i32>} : memref<2x1xf32, #tpu.memory_space<vmem>>, vector<2x1xf32>,
    %250 = vector.extract_strided_slice %247 {offsets = [0, 0], sizes = [2, 32], strides = [1, 1]} : vector<2x33xf32> to vector<2x32xf32>
    %c0_130 = arith.constant 0 : index
    %c0_131 = arith.constant 0 : index
    %251 = vector.load %arg1[%c0_130, %c0_131] : memref<64x32xf32, #tpu.memory_space<vmem>>, vector<64x32xf32>
    %cst_132 = arith.constant dense<0.000000e+00> : vector<2x64xf32>
    %252 = tpu.matmul %250, %251, %cst_132 {dimension_numbers = #tpu.dot_dimension_numbers<[1], [1], [0], [0], [0, 0, 1, 0], [], []>} : vector<2x32xf32>, vector<64x32xf32>, vector<2x64xf32> -> vector<2x64xf32>
    %c0_133 = arith.constant 0 : index
    %c0_134 = arith.constant 0 : index
    %253 = vector.load %arg16[%c0_133, %c0_134] : memref<2x64xf32, #tpu.memory_space<vmem>>, vector<2x64xf32>
    tpu.vector_store %arg16[%c0_133, %c0_134], %252 {strides = array<i32>} : memref<2x64xf32, #tpu.memory_space<vmem>>, vector<2x64xf32>,
    return
  }
}

</mosaic_0001>

<llo_original>
// kernel: a2c_lstm_forward.1
$region0: #{a2c_lstm_forward.1}
  #allocation0 [shape = 'u32[]', space=smem, size = 0x4, offset = 0x4, fixed_abs, tag = 'smem constant byte address 0x4 - core index']
  #allocation1 [shape = 'u32[72,128]{1,0:T(1,128)}', space=vmem, size = 0x9000, scoped, tag = 'internal scratch']
  %s0 = inlined_call_operand.vmem [shape: s32[16,1], index: 0, kind: input, shape index: {}]
  %s1 = inlined_call_operand.vmem [shape: f32[64,32], index: 1, kind: input, shape index: {}]
  %s2 = inlined_call_operand.vmem [shape: f32[2,32,16], index: 2, kind: input, shape index: {}]
  %s3 = inlined_call_operand.vmem [shape: f32[1,16], index: 3, kind: input, shape index: {}]
  %s4 = inlined_call_operand.vmem [shape: f32[3,32,16], index: 4, kind: input, shape index: {}]
  %s5 = inlined_call_operand.vmem [shape: f32[1,16], index: 5, kind: input, shape index: {}]
  %s6 = inlined_call_operand.vmem [shape: f32[32,32], index: 6, kind: input, shape index: {}]
  %s7 = inlined_call_operand.vmem [shape: f32[1,32], index: 7, kind: input, shape index: {}]
  %s8 = inlined_call_operand.vmem [shape: f32[2,32,128], index: 8, kind: input, shape index: {}]
  %s9 = inlined_call_operand.vmem [shape: f32[2,32,128], index: 9, kind: input, shape index: {}]
  %s10 = inlined_call_operand.vmem [shape: f32[2,1,128], index: 10, kind: input, shape index: {}]
  %s11 = inlined_call_operand.vmem [shape: f32[2,2,32], index: 11, kind: input, shape index: {}]
  %s12 = inlined_call_operand.vmem [shape: f32[2,2,32], index: 12, kind: input, shape index: {}]
  %s13 = inlined_call_operand.vmem [shape: f32[32,33], index: 13, kind: input, shape index: {}]
  %s14 = inlined_call_operand.vmem [shape: f32[1,33], index: 14, kind: input, shape index: {}]
  %s15 = inlined_call_operand.vmem [shape: f32[2,1], index: 15, kind: output, shape index: {0}]
  %s16 = inlined_call_operand.hbm [shape: f32[2,64], index: 16, kind: output, shape index: {1}]
  %s17 = inlined_call_operand.hbm [shape: f32[2,2,32], index: 17, kind: output, shape index: {2}]
  %s18 = inlined_call_operand.hbm [shape: f32[2,2,32], index: 18, kind: output, shape index: {3}]
  %19 = xla_tuple %s15, %s16, %s17, %s18
  %s20 = sld [smem:[#allocation0]]
  $region94: #{a2c_lstm_forward.1} parent=0
    _
  %s22 = ssub.s32 1, %s20
  %s23 = scalar_select 0, %s22, %s20
  $region1: #{a2c_lstm_forward.1} parent=0
    #allocation2 [shape = 'u8[1024]{0}', space=vmem, size = 0x400, scoped, tag = 'output window, operand 1, single buffered']
    #allocation3 [shape = 's32[1]{0}', space=sflag, size = 0x4, scoped, tag = 'scoped memory for a2c_lstm_forward.1']
    #allocation4 [shape = 'u8[2048]{0}', space=vmem, size = 0x800, scoped, tag = 'output window, operand 2, single buffered']
    #allocation5 [shape = 's32[1]{0}', space=sflag, size = 0x4, scoped, tag = 'scoped memory for a2c_lstm_forward.1']
    #allocation6 [shape = 'u8[2048]{0}', space=vmem, size = 0x800, scoped, tag = 'output window, operand 3, single buffered']
    %24 = vsyncpa [#allocation3], 0
    %25 = vsyncpa [#allocation5], 0
    // Predicated region
    $region2: #{a2c_lstm_forward.1} parent=1 // pred_check
      _
    $region3: #{a2c_lstm_forward.1} parent=1 // pred_check_branch
      %27 = sbr.rel (0) target = $region5
    $region4: #{a2c_lstm_forward.1} parent=1 // pred_region
      _
    $region5: #{a2c_lstm_forward.1} parent=1 // pred_fallthru
      _
    // Predicated region
    $region6: #{a2c_lstm_forward.1} parent=1 // pred_check
      _
    $region7: #{a2c_lstm_forward.1} parent=1 // pred_check_branch
      %29 = sbr.rel (0) target = $region9
    $region8: #{a2c_lstm_forward.1} parent=1 // pred_region
      _
    $region9: #{a2c_lstm_forward.1} parent=1 // pred_fallthru
      _
    // Predicated region
    $region10: #{a2c_lstm_forward.1} parent=1 // pred_check
      _
    $region11: #{a2c_lstm_forward.1} parent=1 // pred_check_branch
      %31 = sbr.rel (0) target = $region13
    $region12: #{a2c_lstm_forward.1} parent=1 // pred_region
      _
    $region13: #{a2c_lstm_forward.1} parent=1 // pred_fallthru
      _
    // Predicated region
    $region14: #{a2c_lstm_forward.1} parent=1 // pred_check
      _
    $region15: #{a2c_lstm_forward.1} parent=1 // pred_check_branch
      %33 = sbr.rel (0) target = $region17
    $region16: #{a2c_lstm_forward.1} parent=1 // pred_region
      _
    $region17: #{a2c_lstm_forward.1} parent=1 // pred_fallthru
      _
    // Predicated region
    $region18: #{a2c_lstm_forward.1} parent=1 // pred_check
      _
    $region19: #{a2c_lstm_forward.1} parent=1 // pred_check_branch
      %35 = sbr.rel (0) target = $region21
    $region20: #{a2c_lstm_forward.1} parent=1 // pred_region
      _
    $region21: #{a2c_lstm_forward.1} parent=1 // pred_fallthru
      _
    // Predicated region
    $region22: #{a2c_lstm_forward.1} parent=1 // pred_check
      _
    $region23: #{a2c_lstm_forward.1} parent=1 // pred_check_branch
      %37 = sbr.rel (0) target = $region25
    $region24: #{a2c_lstm_forward.1} parent=1 // pred_region
      _
    $region25: #{a2c_lstm_forward.1} parent=1 // pred_fallthru
      _
    // Predicated region
    $region26: #{a2c_lstm_forward.1} parent=1 // pred_check
      _
    $region27: #{a2c_lstm_forward.1} parent=1 // pred_check_branch
      %39 = sbr.rel (0) target = $region29
    $region28: #{a2c_lstm_forward.1} parent=1 // pred_region
      _
    $region29: #{a2c_lstm_forward.1} parent=1 // pred_fallthru
      _
    // Predicated region
    $region30: #{a2c_lstm_forward.1} parent=1 // pred_check
      _
    $region31: #{a2c_lstm_forward.1} parent=1 // pred_check_branch
      %41 = sbr.rel (0) target = $region33
    $region32: #{a2c_lstm_forward.1} parent=1 // pred_region
      _
    $region33: #{a2c_lstm_forward.1} parent=1 // pred_fallthru
      _
    // Predicated region
    $region34: #{a2c_lstm_forward.1} parent=1 // pred_check
      _
    $region35: #{a2c_lstm_forward.1} parent=1 // pred_check_branch
      %43 = sbr.rel (0) target = $region37
    $region36: #{a2c_lstm_forward.1} parent=1 // pred_region
      _
    $region37: #{a2c_lstm_forward.1} parent=1 // pred_fallthru
      _
    // Predicated region
    $region38: #{a2c_lstm_forward.1} parent=1 // pred_check
      _
    $region39: #{a2c_lstm_forward.1} parent=1 // pred_check_branch
      %45 = sbr.rel (0) target = $region41
    $region40: #{a2c_lstm_forward.1} parent=1 // pred_region
      _
    $region41: #{a2c_lstm_forward.1} parent=1 // pred_fallthru
      _
    // Predicated region
    $region42: #{a2c_lstm_forward.1} parent=1 // pred_check
      _
    $region43: #{a2c_lstm_forward.1} parent=1 // pred_check_branch
      %47 = sbr.rel (0) target = $region45
    $region44: #{a2c_lstm_forward.1} parent=1 // pred_region
      _
    $region45: #{a2c_lstm_forward.1} parent=1 // pred_fallthru
      _
    // Predicated region
    $region46: #{a2c_lstm_forward.1} parent=1 // pred_check
      _
    $region47: #{a2c_lstm_forward.1} parent=1 // pred_check_branch
      %49 = sbr.rel (0) target = $region49
    $region48: #{a2c_lstm_forward.1} parent=1 // pred_region
      _
    $region49: #{a2c_lstm_forward.1} parent=1 // pred_fallthru
      _
    // Predicated region
    $region50: #{a2c_lstm_forward.1} parent=1 // pred_check
      _
    $region51: #{a2c_lstm_forward.1} parent=1 // pred_check_branch
      %51 = sbr.rel (0) target = $region53
    $region52: #{a2c_lstm_forward.1} parent=1 // pred_region
      _
    $region53: #{a2c_lstm_forward.1} parent=1 // pred_fallthru
      _
    // Predicated region
    $region54: #{a2c_lstm_forward.1} parent=1 // pred_check
      _
    $region55: #{a2c_lstm_forward.1} parent=1 // pred_check_branch
      %53 = sbr.rel (0) target = $region57
    $region56: #{a2c_lstm_forward.1} parent=1 // pred_region
      _
    $region57: #{a2c_lstm_forward.1} parent=1 // pred_fallthru
      _
    // Predicated region
    $region58: #{a2c_lstm_forward.1} parent=1 // pred_check
      _
    $region59: #{a2c_lstm_forward.1} parent=1 // pred_check_branch
      %55 = sbr.rel (0) target = $region61
    $region60: #{a2c_lstm_forward.1} parent=1 // pred_region
      _
    $region61: #{a2c_lstm_forward.1} parent=1 // pred_fallthru
      _
    %v56 = vld [vmem:[%s0] sm:$0xff]
    %v57 = vld [vmem:[%s0 + $0x8] sm:$0xff]
    %v58 = vlaneseq
    %v59 = vand.u32 %v58, 127
    %60 = vset.pattern.permute.xlu0 0
    %61 = vperm.xlu0 %60, %v56
    %v62 = vpop.permute.xlu0 %61
    %63 = vset.pattern.permute.xlu0 0
    %64 = vperm.xlu0 %63, %v57
    %v65 = vpop.permute.xlu0 %64
    %vm66 = vcmp.eq.s32.totalorder %v59, %v62
    %vm67 = vcmp.eq.s32.totalorder %v59, %v65
    %v68 = vsel %vm66, 1, 0
    %v69 = vsel %vm67, 1, 0
    %v70 = vcvt.s32.f32 %v68
    %v71 = vcvt.s32.f32 %v69
    %v72 = vld [vmem:[%s1] sm:$0xff]
    %v73 = vld [vmem:[%s1 + $0x8] sm:$0xff]
    %v74 = vld [vmem:[%s1 + $0x10] sm:$0xff]
    %v75 = vld [vmem:[%s1 + $0x18] sm:$0xff]
    %v76 = vld [vmem:[%s1 + $0x20] sm:$0xff]
    %v77 = vld [vmem:[%s1 + $0x28] sm:$0xff]
    %v78 = vld [vmem:[%s1 + $0x30] sm:$0xff]
    %v79 = vld [vmem:[%s1 + $0x38] sm:$0xff]
    %vm80 = vcmask 523264
    %v82 = vsel %vm80, %v70, 0
    %v85 = vsel %vm80, %v71, 0
    %87 = vmatpush.msra.mxu0 0.0
    %88 = vmatpush.msra.mxu0 0.0
    %89 = vmatpush.msra.mxu0 0.0
    %90 = vmatpush.msra.mxu0 0.0
    %91 = vmatpush.msra.mxu0 0.0
    %92 = vmatpush.msra.mxu0 0.0
    %93 = vmatpush.msra.mxu0 0.0
    %94 = vmatpush.msra.mxu0 0.0
    %95 = vmatpush.msra.mxu0 %v79
    %96 = vmatpush.msra.mxu0 %v78
    %97 = vmatpush.msra.mxu0 %v77
    %98 = vmatpush.msra.mxu0 %v76
    %99 = vmatpush.msra.mxu0 %v75
    %100 = vmatpush.msra.mxu0 %v74
    %101 = vmatpush.msra.mxu0 %v73
    %102 = vmatpush.msra.mxu0 %v72
    %103 = vmatmul.f32.gmra.mxu0 %v82
    %v104 = vpop.f32.mrf.mxu0
    %v105 = vadd.f32 0.0, %v104
    %106 = vmatmul.f32.gmra.mxu0 %v85
    %v107 = vpop.f32.mrf.mxu0
    %v108 = vadd.f32 0.0, %v107
    %109 = vdwg.mxu0
    %v110 = vlaneseq
    %v111 = vshrl.u32 %v110, 7
    %v112 = vadd.s32 %v111, 8
    %vm113 = vcmp.lt.s32.totalorder %v111, 0
    %v114 = vsub.s32 0, %v111
    %v115 = vsel %vm113, %v114, %v111
    %v116 = vshrl.u32 %v115, 3
    %v117 = vand.u32 %v115, 7
    %v118 = vsub.s32 0, %v117
    %v119 = vsel %vm113, %v118, %v117
    %vm120 = vcmp.lt.s32.totalorder %v112, 0
    %v121 = vsub.s32 0, %v112
    %v122 = vsel %vm120, %v121, %v112
    %v123 = vshrl.u32 %v122, 3
    %v124 = vand.u32 %v122, 7
    %v125 = vsub.s32 0, %v124
    %v126 = vsel %vm120, %v125, %v124
    %vm127 = vcmp.ne.s32.totalorder %v119, 0
    %vm128 = vcmp.ne.s32.totalorder %v126, 0
    %vm129 = vcmp.lt.s32.totalorder %v119, 0
    %vm130 = vcmp.lt.s32.totalorder %v126, 0
    %vm131 = vmand %vm129, %vm127
    %vm132 = vmand %vm130, %vm128
    %v133 = vadd.s32 %v119, 8
    %v134 = vadd.s32 %v126, 8
    %v135 = vsel %vm131, %v133, %v119
    %v136 = vsel %vm132, %v134, %v126
    %v137 = vld [vmem:[%s2] sm:$0xff]
    %v138 = vld [vmem:[%s2 + $0x8] sm:$0xff]
    %v139 = vld [vmem:[%s2 + $0x10] sm:$0xff]
    %v140 = vld [vmem:[%s2 + $0x18] sm:$0xff]
    %s141 = scalar_lea.vmem %s2, 32
    %v142 = vld [vmem:[%s141] sm:$0xff]
    %v143 = vld [vmem:[%s141 + $0x8] sm:$0xff]
    %v144 = vld [vmem:[%s141 + $0x10] sm:$0xff]
    %v145 = vld [vmem:[%s141 + $0x18] sm:$0xff]
    %vm146 = vcmask 261120
    %v148 = vsel %vm146, %v105, 0
    %v151 = vsel %vm146, %v108, 0
    %153 = vmatpush.msra.mxu0 0.0
    %154 = vmatpush.msra.mxu0 0.0
    %155 = vmatpush.msra.mxu0 0.0
    %156 = vmatpush.msra.mxu0 0.0
    %157 = vmatpush.msra.mxu0 0.0
    %158 = vmatpush.msra.mxu0 0.0
    %159 = vmatpush.msra.mxu0 0.0
    %160 = vmatpush.msra.mxu0 0.0
    %161 = vmatpush.msra.mxu0 0.0
    %162 = vmatpush.msra.mxu0 0.0
    %163 = vmatpush.msra.mxu0 0.0
    %164 = vmatpush.msra.mxu0 0.0
    %165 = vmatpush.msra.mxu0 %v145
    %166 = vmatpush.msra.mxu0 %v144
    %167 = vmatpush.msra.mxu0 %v143
    %168 = vmatpush.msra.mxu0 %v142
    %169 = vmatmul.f32.gmra.mxu0 %v148
    %v170 = vpop.f32.mrf.mxu0
    %v171 = vadd.f32 0.0, %v170
    %172 = vmatmul.f32.gmra.mxu0 %v151
    %v173 = vpop.f32.mrf.mxu0
    %v174 = vadd.f32 0.0, %v173
    %175 = vdwg.mxu0
    %vm179 = vcmask 1046528
    %v180 = vrot.slane %v171, 1
    %v181 = vrot.slane %v174, 1
    %v182 = vsel %vm179, %v180, %v181
    %v183 = vrot.slane 0.0, 1
    %v184 = vsel %vm179, %v181, %v183
    %187 = vmatpush.msra.mxu0 0.0
    %188 = vmatpush.msra.mxu0 0.0
    %189 = vmatpush.msra.mxu0 0.0
    %190 = vmatpush.msra.mxu0 0.0
    %191 = vmatpush.msra.mxu0 0.0
    %192 = vmatpush.msra.mxu0 0.0
    %193 = vmatpush.msra.mxu0 0.0
    %194 = vmatpush.msra.mxu0 0.0
    %195 = vmatpush.msra.mxu0 0.0
    %196 = vmatpush.msra.mxu0 0.0
    %197 = vmatpush.msra.mxu0 0.0
    %198 = vmatpush.msra.mxu0 0.0
    %199 = vmatpush.msra.mxu0 %v140
    %200 = vmatpush.msra.mxu0 %v139
    %201 = vmatpush.msra.mxu0 %v138
    %202 = vmatpush.msra.mxu0 %v137
    %203 = vmatmul.f32.gmra.mxu0 %v148
    %v204 = vpop.f32.mrf.mxu0
    %v205 = vadd.f32 %v182, %v204
    %206 = vmatmul.f32.gmra.mxu0 %v151
    %v207 = vpop.f32.mrf.mxu0
    %v208 = vadd.f32 %v184, %v207
    %209 = vdwg.mxu0
    %v210 = vld [vmem:[%s3] sm:$0x1]
    %v212 = vperm.slane %v210, 0
    %v214 = vadd.f32 %v205, %v212
    %v215 = vadd.f32 %v208, %v212
    %v216 = vmax.f32 %v214, 0.0
    %v217 = vmax.f32 %v215, 0.0
    %vm218 = vcmp.lt.s32.totalorder %v135, 7
    %vm219 = vcmp.lt.s32.totalorder %v136, 7
    %v220 = vsel %vm218, 1, 0
    %v221 = vsel %vm219, 1, 0
    %vm222 = vcmp.eq.s32.totalorder %v220, 1
    %vm223 = vcmp.eq.s32.totalorder %v221, 1
    %v224 = vsel %vm222, %v216, 0.0
    %v225 = vsel %vm223, %v217, 0.0
    %vm226 = vcmask 130048
    %v227 = vsel %vm226, %v224, -inf
    %v228 = vrot.slane %v227, 4
    %v229 = vmax.f32 %v227, %v228
    %v230 = vrot.slane %v229, 2
    %v231 = vmax.f32 %v229, %v230
    %v232 = vrot.slane %v231, 1
    %v233 = vmax.f32 %v231, %v232
    %vm234 = vcmp.eq.s32.totalorder %v111, 0
    %v235 = vsel %vm234, 1, 0
    %vm236 = vcmp.eq.s32.totalorder %v235, 1
    %v237 = vsel %vm236, %v233, 0.0
    %v238 = vadd.f32 %v237, 0.0
    %v239 = vsel %vm226, %v225, -inf
    %v240 = vrot.slane %v239, 4
    %v241 = vmax.f32 %v239, %v240
    %v242 = vrot.slane %v241, 2
    %v243 = vmax.f32 %v241, %v242
    %v244 = vrot.slane %v243, 1
    %v245 = vmax.f32 %v243, %v244
    %vm246 = vcmp.eq.s32.totalorder %v111, 1
    %v247 = vsel %vm246, 1, 0
    %vm248 = vcmp.eq.s32.totalorder %v247, 1
    %v249 = vsel %vm248, %v245, 0.0
    %v250 = vadd.f32 %v238, %v249
    %v251 = vld [vmem:[%s6] sm:$0xff]
    %v252 = vld [vmem:[%s6 + $0x8] sm:$0xff]
    %v253 = vld [vmem:[%s4] sm:$0xff]
    %v254 = vld [vmem:[%s4 + $0x8] sm:$0xff]
    %v255 = vld [vmem:[%s4 + $0x10] sm:$0xff]
    %v256 = vld [vmem:[%s4 + $0x18] sm:$0xff]
    %s257 = scalar_lea.vmem %s4, 32
    %v258 = vld [vmem:[%s257] sm:$0xff]
    %v259 = vld [vmem:[%s257 + $0x8] sm:$0xff]
    %v260 = vld [vmem:[%s257 + $0x10] sm:$0xff]
    %v261 = vld [vmem:[%s257 + $0x18] sm:$0xff]
    %262 = vmatpush.msra.mxu0 0.0
    %263 = vmatpush.msra.mxu0 0.0
    %264 = vmatpush.msra.mxu0 0.0
    %265 = vmatpush.msra.mxu0 0.0
    %266 = vmatpush.msra.mxu0 0.0
    %267 = vmatpush.msra.mxu0 0.0
    %268 = vmatpush.msra.mxu0 0.0
    %269 = vmatpush.msra.mxu0 0.0
    %270 = vmatpush.msra.mxu0 0.0
    %271 = vmatpush.msra.mxu0 0.0
    %272 = vmatpush.msra.mxu0 0.0
    %273 = vmatpush.msra.mxu0 0.0
    %274 = vmatpush.msra.mxu0 %v261
    %275 = vmatpush.msra.mxu0 %v260
    %276 = vmatpush.msra.mxu0 %v259
    %277 = vmatpush.msra.mxu0 %v258
    %278 = vmatmul.f32.gmra.mxu0 %v148
    %v279 = vpop.f32.mrf.mxu0
    %v280 = vadd.f32 0.0, %v279
    %281 = vmatmul.f32.gmra.mxu0 %v151
    %v282 = vpop.f32.mrf.mxu0
    %v283 = vadd.f32 0.0, %v282
    %284 = vdwg.mxu0
    %v287 = vrot.slane %v280, 1
    %v288 = vrot.slane %v283, 1
    %v289 = vsel %vm179, %v287, %v288
    %v290 = vsel %vm179, %v288, %v183
    %293 = vmatpush.msra.mxu0 0.0
    %294 = vmatpush.msra.mxu0 0.0
    %295 = vmatpush.msra.mxu0 0.0
    %296 = vmatpush.msra.mxu0 0.0
    %297 = vmatpush.msra.mxu0 0.0
    %298 = vmatpush.msra.mxu0 0.0
    %299 = vmatpush.msra.mxu0 0.0
    %300 = vmatpush.msra.mxu0 0.0
    %301 = vmatpush.msra.mxu0 0.0
    %302 = vmatpush.msra.mxu0 0.0
    %303 = vmatpush.msra.mxu0 0.0
    %304 = vmatpush.msra.mxu0 0.0
    %305 = vmatpush.msra.mxu0 %v256
    %306 = vmatpush.msra.mxu0 %v255
    %307 = vmatpush.msra.mxu0 %v254
    %308 = vmatpush.msra.mxu0 %v253
    %309 = vmatmul.f32.gmra.mxu0 %v148
    %v310 = vpop.f32.mrf.mxu0
    %v311 = vadd.f32 %v289, %v310
    %312 = vmatmul.f32.gmra.mxu0 %v151
    %v313 = vpop.f32.mrf.mxu0
    %v314 = vadd.f32 %v290, %v313
    %315 = vdwg.mxu0
    %s316 = scalar_lea.vmem %s4, 64
    %v317 = vld [vmem:[%s316] sm:$0xff]
    %v318 = vld [vmem:[%s316 + $0x8] sm:$0xff]
    %v319 = vld [vmem:[%s316 + $0x10] sm:$0xff]
    %v320 = vld [vmem:[%s316 + $0x18] sm:$0xff]
    %321 = vmatpush.msra.mxu0 0.0
    %322 = vmatpush.msra.mxu0 0.0
    %323 = vmatpush.msra.mxu0 0.0
    %324 = vmatpush.msra.mxu0 0.0
    %325 = vmatpush.msra.mxu0 0.0
    %326 = vmatpush.msra.mxu0 0.0
    %327 = vmatpush.msra.mxu0 0.0
    %328 = vmatpush.msra.mxu0 0.0
    %329 = vmatpush.msra.mxu0 0.0
    %330 = vmatpush.msra.mxu0 0.0
    %331 = vmatpush.msra.mxu0 0.0
    %332 = vmatpush.msra.mxu0 0.0
    %333 = vmatpush.msra.mxu0 %v320
    %334 = vmatpush.msra.mxu0 %v319
    %335 = vmatpush.msra.mxu0 %v318
    %336 = vmatpush.msra.mxu0 %v317
    %337 = vmatmul.f32.gmra.mxu0 %v148
    %v338 = vpop.f32.mrf.mxu0
    %v339 = vadd.f32 0.0, %v338
    %340 = vmatmul.f32.gmra.mxu0 %v151
    %v341 = vpop.f32.mrf.mxu0
    %v342 = vadd.f32 0.0, %v341
    %343 = vdwg.mxu0
    %vm346 = vcmask 1045504
    %v347 = vrot.slane %v339, 2
    %v348 = vrot.slane %v342, 2
    %v349 = vsel %vm346, %v347, %v348
    %v350 = vrot.slane 0.0, 2
    %v351 = vsel %vm346, %v348, %v350
    %v354 = vadd.f32 %v311, %v349
    %v355 = vadd.f32 %v314, %v351
    %v356 = vld [vmem:[%s5] sm:$0x1]
    %v358 = vperm.slane %v356, 0
    %v360 = vadd.f32 %v354, %v358
    %v361 = vadd.f32 %v355, %v358
    %v362 = vmax.f32 %v360, 0.0
    %v363 = vmax.f32 %v361, 0.0
    %vm364 = vcmp.lt.s32.totalorder %v135, 6
    %vm365 = vcmp.lt.s32.totalorder %v136, 6
    %v366 = vsel %vm364, 1, 0
    %v367 = vsel %vm365, 1, 0
    %vm368 = vcmp.eq.s32.totalorder %v366, 1
    %vm369 = vcmp.eq.s32.totalorder %v367, 1
    %v370 = vsel %vm368, %v362, 0.0
    %v371 = vsel %vm369, %v363, 0.0
    %v372 = vsel %vm226, %v370, -inf
    %v373 = vrot.slane %v372, 4
    %v374 = vmax.f32 %v372, %v373
    %v375 = vrot.slane %v374, 2
    %v376 = vmax.f32 %v374, %v375
    %v377 = vrot.slane %v376, 1
    %v378 = vmax.f32 %v376, %v377
    %v379 = vsel %vm236, %v378, 0.0
    %v380 = vadd.f32 %v379, 0.0
    %v381 = vsel %vm226, %v371, -inf
    %v382 = vrot.slane %v381, 4
    %v383 = vmax.f32 %v381, %v382
    %v384 = vrot.slane %v383, 2
    %v385 = vmax.f32 %v383, %v384
    %v386 = vrot.slane %v385, 1
    %v387 = vmax.f32 %v385, %v386
    %v388 = vsel %vm248, %v387, 0.0
    %v389 = vadd.f32 %v380, %v388
    %v390 = vld [vmem:[%s6 + $0x10] sm:$0xff]
    %v391 = vld [vmem:[%s6 + $0x18] sm:$0xff]
    %v393 = vsel %vm226, %v389, 0
    %395 = vmatpush.msra.mxu0 0.0
    %396 = vmatpush.msra.mxu0 0.0
    %397 = vmatpush.msra.mxu0 0.0
    %398 = vmatpush.msra.mxu0 0.0
    %399 = vmatpush.msra.mxu0 0.0
    %400 = vmatpush.msra.mxu0 0.0
    %401 = vmatpush.msra.mxu0 0.0
    %402 = vmatpush.msra.mxu0 0.0
    %403 = vmatpush.msra.mxu0 0.0
    %404 = vmatpush.msra.mxu0 0.0
    %405 = vmatpush.msra.mxu0 0.0
    %406 = vmatpush.msra.mxu0 0.0
    %407 = vmatpush.msra.mxu0 0.0
    %408 = vmatpush.msra.mxu0 0.0
    %409 = vmatpush.msra.mxu0 %v391
    %410 = vmatpush.msra.mxu0 %v390
    %411 = vmatmul.f32.gmra.mxu0 %v393
    %v412 = vpop.f32.mrf.mxu0
    %v413 = vadd.f32 0.0, %v412
    %414 = vdwg.mxu0
    %v416 = vsel %vm226, %v250, 0
    %418 = vmatpush.msra.mxu0 0.0
    %419 = vmatpush.msra.mxu0 0.0
    %420 = vmatpush.msra.mxu0 0.0
    %421 = vmatpush.msra.mxu0 0.0
    %422 = vmatpush.msra.mxu0 0.0
    %423 = vmatpush.msra.mxu0 0.0
    %424 = vmatpush.msra.mxu0 0.0
    %425 = vmatpush.msra.mxu0 0.0
    %426 = vmatpush.msra.mxu0 0.0
    %427 = vmatpush.msra.mxu0 0.0
    %428 = vmatpush.msra.mxu0 0.0
    %429 = vmatpush.msra.mxu0 0.0
    %430 = vmatpush.msra.mxu0 0.0
    %431 = vmatpush.msra.mxu0 0.0
    %432 = vmatpush.msra.mxu0 %v252
    %433 = vmatpush.msra.mxu0 %v251
    %434 = vmatmul.f32.gmra.mxu0 %v416
    %v435 = vpop.f32.mrf.mxu0
    %v436 = vadd.f32 %v413, %v435
    %437 = vdwg.mxu0
    %v438 = vld [vmem:[%s7] sm:$0x1]
    %v440 = vperm.slane %v438, 0
    %v442 = vadd.f32 %v436, %v440
    %v443 = vld [vmem:[%s11] sm:$0x3]
    %v444 = vld [vmem:[%s12] sm:$0x3]
    %v445 = vld [vmem:[%s8] sm:$0xff]
    %v446 = vld [vmem:[%s8 + $0x8] sm:$0xff]
    %v447 = vld [vmem:[%s8 + $0x10] sm:$0xff]
    %v448 = vld [vmem:[%s8 + $0x18] sm:$0xff]
    %v449 = vld [vmem:[%s9] sm:$0xff]
    %v450 = vld [vmem:[%s9 + $0x8] sm:$0xff]
    %v451 = vld [vmem:[%s9 + $0x10] sm:$0xff]
    %v452 = vld [vmem:[%s9 + $0x18] sm:$0xff]
    %v454 = vsel %vm146, %v443, 0
    %456 = vmatpush.msra.mxu0 0.0
    %457 = vmatpush.msra.mxu0 0.0
    %458 = vmatpush.msra.mxu0 0.0
    %459 = vmatpush.msra.mxu0 0.0
    %460 = vmatpush.msra.mxu0 0.0
    %461 = vmatpush.msra.mxu0 0.0
    %462 = vmatpush.msra.mxu0 0.0
    %463 = vmatpush.msra.mxu0 0.0
    %464 = vmatpush.msra.mxu0 0.0
    %465 = vmatpush.msra.mxu0 0.0
    %466 = vmatpush.msra.mxu0 0.0
    %467 = vmatpush.msra.mxu0 0.0
    %468 = vmatpush.msra.mxu0 %v452
    %469 = vmatpush.msra.mxu0 %v451
    %470 = vmatpush.msra.mxu0 %v450
    %471 = vmatpush.msra.mxu0 %v449
    %472 = vmatmul.f32.gmra.mxu0 %v454
    %v473 = vpop.f32.mrf.mxu0
    %v474 = vadd.f32 0.0, %v473
    %475 = vdwg.mxu0
    %v477 = vsel %vm146, %v442, 0
    %479 = vmatpush.msra.mxu0 0.0
    %480 = vmatpush.msra.mxu0 0.0
    %481 = vmatpush.msra.mxu0 0.0
    %482 = vmatpush.msra.mxu0 0.0
    %483 = vmatpush.msra.mxu0 0.0
    %484 = vmatpush.msra.mxu0 0.0
    %485 = vmatpush.msra.mxu0 0.0
    %486 = vmatpush.msra.mxu0 0.0
    %487 = vmatpush.msra.mxu0 0.0
    %488 = vmatpush.msra.mxu0 0.0
    %489 = vmatpush.msra.mxu0 0.0
    %490 = vmatpush.msra.mxu0 0.0
    %491 = vmatpush.msra.mxu0 %v448
    %492 = vmatpush.msra.mxu0 %v447
    %493 = vmatpush.msra.mxu0 %v446
    %494 = vmatpush.msra.mxu0 %v445
    %495 = vmatmul.f32.gmra.mxu0 %v477
    %v496 = vpop.f32.mrf.mxu0
    %v497 = vadd.f32 %v474, %v496
    %498 = vdwg.mxu0
    %v499 = vld [vmem:[%s10] sm:$0x1]
    %v501 = vperm.slane %v499, 0
    %v503 = vadd.f32 %v497, %v501
    %v504 = vsub.f32 0.0, %v503
    %v505 = vmul.f32 %v504, 1.442695
    %v506 = vpow.pop %v505
    %v507 = vadd.f32 %v506, 1.0
    %v508 = vrcp.pop %v507
    %v509 = vmul.f32 %v507, %v508
    %v510 = vsub.f32 1.0, %v509
    %v511 = vmul.f32 %v508, %v510
    %v512 = vadd.f32 %v508, %v511
    %vm513 = vweird.f32 %v507
    %vm514 = vweird.f32 %v508
    %vm515 = vmor %vm513, %vm514
    %v516 = vsel %vm515, %v508, %v512
    %v517 = vand.u32 2147483647, %v507
    %vm518 = vcmp.eq.f32.partialorder %v517, 8.507059e+37
    %v519 = vand.u32 %v507, 2147483648
    %v520 = vor.u32 1.1754944e-38, %v519
    %v521 = vsel %vm518, %v520, %v516
    %v522 = vmul.f32 1.0, %v521
    %v523 = vtanh.pop %v503
    %525 = vrot.lane.b32.xlu0 %v444, 32
    %v526 = vpop.permute.xlu0 %525
    %v528 = vmul.f32 %v522, %v526
    %530 = vrot.lane.b32.xlu0 %v523, 64
    %v531 = vpop.permute.xlu0 %530
    %v533 = vmul.f32 %v522, %v531
    %535 = vrot.lane.b32.xlu0 %v533, 32
    %v536 = vpop.permute.xlu0 %535
    %v538 = vadd.f32 %v528, %v536
    %v539 = vtanh.pop %v538
    %541 = vrot.lane.b32.xlu0 %v539, 64
    %v542 = vpop.permute.xlu0 %541
    %v544 = vmul.f32 %v522, %v542
    %546 = vrot.lane.b32.xlu0 %v544, 32
    %v547 = vpop.permute.xlu0 %546
    %vm549 = vcmask 254976
    %550 = vst.msk [vmem:[#allocation4] sm:$0x3] %vm549, %v547
    %552 = vrot.lane.b32.xlu0 %v538, 96
    %v553 = vpop.permute.xlu0 %552
    %555 = vst.msk [vmem:[#allocation6] sm:$0x3] %vm549, %v553
    %s556 = scalar_lea.vmem %s11, 2
    %v557 = vld [vmem:[%s556] sm:$0x3]
    %s558 = scalar_lea.vmem %s12, 2
    %v559 = vld [vmem:[%s558] sm:$0x3]
    %s560 = scalar_lea.vmem %s8, 32
    %v561 = vld [vmem:[%s560] sm:$0xff]
    %v562 = vld [vmem:[%s560 + $0x8] sm:$0xff]
    %v563 = vld [vmem:[%s560 + $0x10] sm:$0xff]
    %v564 = vld [vmem:[%s560 + $0x18] sm:$0xff]
    %s565 = scalar_lea.vmem %s9, 32
    %v566 = vld [vmem:[%s565] sm:$0xff]
    %v567 = vld [vmem:[%s565 + $0x8] sm:$0xff]
    %v568 = vld [vmem:[%s565 + $0x10] sm:$0xff]
    %v569 = vld [vmem:[%s565 + $0x18] sm:$0xff]
    %v571 = vsel %vm146, %v557, 0
    %573 = vmatpush.msra.mxu0 0.0
    %574 = vmatpush.msra.mxu0 0.0
    %575 = vmatpush.msra.mxu0 0.0
    %576 = vmatpush.msra.mxu0 0.0
    %577 = vmatpush.msra.mxu0 0.0
    %578 = vmatpush.msra.mxu0 0.0
    %579 = vmatpush.msra.mxu0 0.0
    %580 = vmatpush.msra.mxu0 0.0
    %581 = vmatpush.msra.mxu0 0.0
    %582 = vmatpush.msra.mxu0 0.0
    %583 = vmatpush.msra.mxu0 0.0
    %584 = vmatpush.msra.mxu0 0.0
    %585 = vmatpush.msra.mxu0 %v569
    %586 = vmatpush.msra.mxu0 %v568
    %587 = vmatpush.msra.mxu0 %v567
    %588 = vmatpush.msra.mxu0 %v566
    %589 = vmatmul.f32.gmra.mxu0 %v571
    %v590 = vpop.f32.mrf.mxu0
    %v591 = vadd.f32 0.0, %v590
    %592 = vdwg.mxu0
    %v593 = vsel %vm146, %v547, 0
    %595 = vmatpush.msra.mxu0 0.0
    %596 = vmatpush.msra.mxu0 0.0
    %597 = vmatpush.msra.mxu0 0.0
    %598 = vmatpush.msra.mxu0 0.0
    %599 = vmatpush.msra.mxu0 0.0
    %600 = vmatpush.msra.mxu0 0.0
    %601 = vmatpush.msra.mxu0 0.0
    %602 = vmatpush.msra.mxu0 0.0
    %603 = vmatpush.msra.mxu0 0.0
    %604 = vmatpush.msra.mxu0 0.0
    %605 = vmatpush.msra.mxu0 0.0
    %606 = vmatpush.msra.mxu0 0.0
    %607 = vmatpush.msra.mxu0 %v564
    %608 = vmatpush.msra.mxu0 %v563
    %609 = vmatpush.msra.mxu0 %v562
    %610 = vmatpush.msra.mxu0 %v561
    %611 = vmatmul.f32.gmra.mxu0 %v593
    %v612 = vpop.f32.mrf.mxu0
    %v613 = vadd.f32 %v591, %v612
    %614 = vdwg.mxu0
    %s615 = scalar_lea.vmem %s10, 1
    %v616 = vld [vmem:[%s615] sm:$0x1]
    %v618 = vperm.slane %v616, 0
    %v620 = vadd.f32 %v613, %v618
    %v621 = vsub.f32 0.0, %v620
    %v622 = vmul.f32 %v621, 1.442695
    %v623 = vpow.pop %v622
    %v624 = vadd.f32 %v623, 1.0
    %v625 = vrcp.pop %v624
    %v626 = vmul.f32 %v624, %v625
    %v627 = vsub.f32 1.0, %v626
    %v628 = vmul.f32 %v625, %v627
    %v629 = vadd.f32 %v625, %v628
    %vm630 = vweird.f32 %v624
    %vm631 = vweird.f32 %v625
    %vm632 = vmor %vm630, %vm631
    %v633 = vsel %vm632, %v625, %v629
    %v634 = vand.u32 2147483647, %v624
    %vm635 = vcmp.eq.f32.partialorder %v634, 8.507059e+37
    %v636 = vand.u32 %v624, 2147483648
    %v637 = vor.u32 1.1754944e-38, %v636
    %v638 = vsel %vm635, %v637, %v633
    %v639 = vmul.f32 1.0, %v638
    %v640 = vtanh.pop %v620
    %642 = vrot.lane.b32.xlu0 %v559, 32
    %v643 = vpop.permute.xlu0 %642
    %v645 = vmul.f32 %v639, %v643
    %647 = vrot.lane.b32.xlu0 %v640, 64
    %v648 = vpop.permute.xlu0 %647
    %v650 = vmul.f32 %v639, %v648
    %652 = vrot.lane.b32.xlu0 %v650, 32
    %v653 = vpop.permute.xlu0 %652
    %v655 = vadd.f32 %v645, %v653
    %v656 = vtanh.pop %v655
    %658 = vrot.lane.b32.xlu0 %v656, 64
    %v659 = vpop.permute.xlu0 %658
    %v661 = vmul.f32 %v639, %v659
    %663 = vrot.lane.b32.xlu0 %v661, 32
    %v664 = vpop.permute.xlu0 %663
    %s666 = scalar_lea.vmem [#allocation4], 2
    %667 = vst.msk [vmem:[%s666] sm:$0x3] %vm549, %v664
    %669 = vrot.lane.b32.xlu0 %v655, 96
    %v670 = vpop.permute.xlu0 %669
    %s672 = scalar_lea.vmem [#allocation6], 2
    %673 = vst.msk [vmem:[%s672] sm:$0x3] %vm549, %v670
    %v674 = vld [vmem:[%s13] sm:$0xff]
    %v675 = vld [vmem:[%s13 + $0x8] sm:$0xff]
    %v676 = vld [vmem:[%s13 + $0x10] sm:$0xff]
    %v677 = vld [vmem:[%s13 + $0x18] sm:$0xff]
    %v678 = vld [vmem:[%s14] sm:$0x1]
    %v680 = vperm.slane %v678, 0
    %v682 = vsel %vm146, %v664, 0
    %684 = vmatpush.msra.mxu0 0.0
    %685 = vmatpush.msra.mxu0 0.0
    %686 = vmatpush.msra.mxu0 0.0
    %687 = vmatpush.msra.mxu0 0.0
    %688 = vmatpush.msra.mxu0 0.0
    %689 = vmatpush.msra.mxu0 0.0
    %690 = vmatpush.msra.mxu0 0.0
    %691 = vmatpush.msra.mxu0 0.0
    %692 = vmatpush.msra.mxu0 0.0
    %693 = vmatpush.msra.mxu0 0.0
    %694 = vmatpush.msra.mxu0 0.0
    %695 = vmatpush.msra.mxu0 0.0
    %696 = vmatpush.msra.mxu0 %v677
    %697 = vmatpush.msra.mxu0 %v676
    %698 = vmatpush.msra.mxu0 %v675
    %699 = vmatpush.msra.mxu0 %v674
    %700 = vmatmul.f32.gmra.mxu0 %v682
    %v701 = vpop.f32.mrf.mxu0
    %v702 = vadd.f32 %v680, %v701
    %703 = vdwg.mxu0
    %705 = vrot.lane.b32.xlu0 %v702, 96
    %v706 = vpop.permute.xlu0 %705
    %vm708 = vcmask 1024
    %709 = vst.msk [vmem:[%s15] sm:$0x3] %vm708, %v706
    %v710 = vld [vmem:[%s1] sm:$0xff]
    %v711 = vld [vmem:[%s1 + $0x8] sm:$0xff]
    %v712 = vld [vmem:[%s1 + $0x10] sm:$0xff]
    %v713 = vld [vmem:[%s1 + $0x18] sm:$0xff]
    %v714 = vld [vmem:[%s1 + $0x20] sm:$0xff]
    %v715 = vld [vmem:[%s1 + $0x28] sm:$0xff]
    %v716 = vld [vmem:[%s1 + $0x30] sm:$0xff]
    %v717 = vld [vmem:[%s1 + $0x38] sm:$0xff]
    %v718 = vsel %vm146, %v702, 0
    %v721 = vsel %vm146, %v710, 0
    %v724 = vsel %vm146, %v711, 0
    %v727 = vsel %vm146, %v712, 0
    %v730 = vsel %vm146, %v713, 0
    %v733 = vsel %vm146, %v714, 0
    %v736 = vsel %vm146, %v715, 0
    %v739 = vsel %vm146, %v716, 0
    %v742 = vsel %vm146, %v717, 0
    %744 = vmatpush.xpose.msra.mxu0 0.0
    %745 = vmatpush.xpose.msra.mxu0 0.0
    %746 = vmatpush.xpose.msra.mxu0 0.0
    %747 = vmatpush.xpose.msra.mxu0 0.0
    %748 = vmatpush.xpose.msra.mxu0 0.0
    %749 = vmatpush.xpose.msra.mxu0 0.0
    %750 = vmatpush.xpose.msra.mxu0 0.0
    %751 = vmatpush.xpose.msra.mxu0 0.0
    %752 = vmatpush.xpose.msra.mxu0 %v742
    %753 = vmatpush.xpose.msra.mxu0 %v739
    %754 = vmatpush.xpose.msra.mxu0 %v736
    %755 = vmatpush.xpose.msra.mxu0 %v733
    %756 = vmatpush.xpose.msra.mxu0 %v730
    %757 = vmatpush.xpose.msra.mxu0 %v727
    %758 = vmatpush.xpose.msra.mxu0 %v724
    %759 = vmatpush.xpose.msra.mxu0 %v721
    %760 = vmatmul.f32.gmra.mxu0 %v718
    %v761 = vpop.f32.mrf.mxu0
    %v762 = vadd.f32 0.0, %v761
    %763 = vdwg.mxu0
    %vm764 = vcmask 517120
    %765 = vst.msk [vmem:[#allocation2] sm:$0x3] %vm764, %v762
    // Predicated region
    $region62: #{a2c_lstm_forward.1} parent=1 // pred_check
      _
    $region63: #{a2c_lstm_forward.1} parent=1 // pred_check_branch
      %767 = sbr.rel (0) target = $region65
    $region64: #{a2c_lstm_forward.1} parent=1 // pred_region
      _
    $region65: #{a2c_lstm_forward.1} parent=1 // pred_fallthru
      _
    // Predicated region
    $region66: #{a2c_lstm_forward.1} parent=1 // pred_check
      _
    $region67: #{a2c_lstm_forward.1} parent=1 // pred_check_branch
      %769 = sbr.rel (0) target = $region69
    $region68: #{a2c_lstm_forward.1} parent=1 // pred_region
      %771 = vsyncadd [#allocation3], 0
      %s773 = sshll.u32 [#allocation2], 4
      %s774 = int_to_ptr.vmem [resolvable:$true] %s773
      %s775 = sshll.u32 %s16, 4
      %s776 = int_to_ptr.hbm [resolvable:$true] %s775
      %778 = dma.vmem_to_hbm [thread:$0]  %s774, 32, %s776, [#allocation3]
    $region69: #{a2c_lstm_forward.1} parent=1 // pred_fallthru
      _
    // Predicated region
    $region70: #{a2c_lstm_forward.1} parent=1 // pred_check
      _
    $region71: #{a2c_lstm_forward.1} parent=1 // pred_check_branch
      %780 = sbr.rel (0) target = $region73
    $region72: #{a2c_lstm_forward.1} parent=1 // pred_region
      %782 = vsyncadd [#allocation5], 0
      %s783 = sshll.u32 [#allocation4], 4
      %s784 = int_to_ptr.vmem [resolvable:$true] %s783
      %s785 = sshll.u32 %s17, 4
      %s786 = int_to_ptr.hbm [resolvable:$true] %s785
      %791 = dma.vmem_to_hbm [thread:$0]  %s784, 64, %s786, [#allocation5], 32, 32, 2
    $region73: #{a2c_lstm_forward.1} parent=1 // pred_fallthru
      _
    // Predicated region
    $region74: #{a2c_lstm_forward.1} parent=1 // pred_check
      _
    $region75: #{a2c_lstm_forward.1} parent=1 // pred_check_branch
      %793 = sbr.rel (0) target = $region77
    $region76: #{a2c_lstm_forward.1} parent=1 // pred_region
      %795 = vsyncadd [#allocation5], 0
      %s796 = sshll.u32 [#allocation6], 4
      %s797 = int_to_ptr.vmem [resolvable:$true] %s796
      %s798 = sshll.u32 %s18, 4
      %s799 = int_to_ptr.hbm [resolvable:$true] %s798
      %804 = dma.vmem_to_hbm [thread:$0]  %s797, 64, %s799, [#allocation5], 32, 32, 2
    $region77: #{a2c_lstm_forward.1} parent=1 // pred_fallthru
      _
    // Predicated region
    $region78: #{a2c_lstm_forward.1} parent=1 // pred_check
      _
    $region79: #{a2c_lstm_forward.1} parent=1 // pred_check_branch
      %806 = sbr.rel (0) target = $region81
    $region80: #{a2c_lstm_forward.1} parent=1 // pred_region
      _
    $region81: #{a2c_lstm_forward.1} parent=1 // pred_fallthru
      _
    // Predicated region
    $region82: #{a2c_lstm_forward.1} parent=1 // pred_check
      _
    $region83: #{a2c_lstm_forward.1} parent=1 // pred_check_branch
      %808 = sbr.rel (0) target = $region85
    $region84: #{a2c_lstm_forward.1} parent=1 // pred_region
      %810 = dma.done [#allocation3], 32
    $region85: #{a2c_lstm_forward.1} parent=1 // pred_fallthru
      _
    // Predicated region
    $region86: #{a2c_lstm_forward.1} parent=1 // pred_check
      _
    $region87: #{a2c_lstm_forward.1} parent=1 // pred_check_branch
      %812 = sbr.rel (0) target = $region89
    $region88: #{a2c_lstm_forward.1} parent=1 // pred_region
      %814 = dma.done [#allocation5], 64
    $region89: #{a2c_lstm_forward.1} parent=1 // pred_fallthru
      _
    // Predicated region
    $region90: #{a2c_lstm_forward.1} parent=1 // pred_check
      _
    $region91: #{a2c_lstm_forward.1} parent=1 // pred_check_branch
      %816 = sbr.rel (0) target = $region93
    $region92: #{a2c_lstm_forward.1} parent=1 // pred_region
      %818 = dma.done [#allocation5], 64
    $region93: #{a2c_lstm_forward.1} parent=1 // pred_fallthru
      _
    %819 = vsyncpa [#allocation3], 1
    %820 = vsyncpa [#allocation5], 1

</llo_original>
